<compile_context>
chip_gen: v5e
topology: v5e:2x2
jax: 0.10.0
libtpu: 0.0.40
codegen_flags: <defaults>
</compile_context>

<pallas_src>
import jax
import jax.numpy as jnp
from jax.experimental import pallas as pl
from jax.experimental.pallas import tpu as pltpu

B = 2                 # batch
F = 16                # input_size (15 motion channels + 1 heart-rate channel)
D = 256               # out_dimension (hypervector width)
NGRAMS = 7
N_WIN = F - NGRAMS    # 9 windows: original model loops i = 1 .. F-NGRAMS
MOTION_LEVELS = 3000
HR_LEVELS = 200
NUM_CLASSES = 2


def _hdc_kernel(idx_ref,     # SMEM  (B, F) int32      scalar-prefetch level indices
                tbl_hbm,     # ANY   (3200, D) f32     merged level table (HBM resident)
                keys_ref,    # VMEM  (F, D) f32        key hypervectors, rows >= N_WIN zeroed
                cdiff_ref,   # VMEM  (1, D) f32        normalized centroid[1] - centroid[0]
                o_ref,       # VMEM  (B, 1) f32        class-1 probability per batch row
                enc_sc,      # VMEM scratch (B*F, D)   gathered level hypervectors
                sems):       # DMA semaphores (B*F,)
    # ---- issue all B*F row-gather DMAs back-to-back (they overlap in the DMA engine) ----
    # Indices were clipped in the wrapper, so every dynamic source offset is in range
    # (DMA bounds checking is the only default runtime check).
    copies = []
    for b in range(B):
        batch_copies = []
        for f in range(F):
            r = b * F + f
            cp = pltpu.make_async_copy(
                tbl_hbm.at[pl.ds(idx_ref[b, f], 1), :],
                enc_sc.at[pl.ds(r, 1), :],
                sems.at[r])
            cp.start()
            batch_copies.append(cp)
        copies.append(batch_copies)

    keys_pad = keys_ref[...]    # (F, D); rows >= N_WIN were pre-zeroed in the wrapper
    cdiff = cdiff_ref[...]      # (1, D)

    for b in range(B):
        # Wait only on this batch's rows: while batch 0 computes on the VPU/XLU,
        # batch 1's DMAs keep completing in the background.
        for cp in copies[b]:
            cp.wait()
        enc_b = enc_sc[b * F:(b + 1) * F, :]        # (F, D), sublane-aligned view

        # ---- n-gram binding (MAP: bind = *, permute = lane roll) + bundling ----
        # term_j row k = roll_lane(enc_b[(k+1+j) mod F], NGRAMS-1-j), built with
        # a lane roll + a sublane roll on the full aligned (F, D) tile (no
        # tile-boundary-crossing slices).  Rows k < N_WIN of the running product
        # are exactly torchhd's ngrams windows; rows >= N_WIN are wrap-around
        # garbage that the zero-padded key rows kill in the bundling sum.
        prod = None
        for j in range(NGRAMS):
            lane_shift = NGRAMS - 1 - j
            term = pltpu.roll(enc_b, shift=lane_shift, axis=1) if lane_shift else enc_b
            term = pltpu.roll(term, shift=F - 1 - j, axis=0)
            prod = term if prod is None else prod * term

        # bind with keys[:-ngram], multiset-bundle (sum over the N_WIN windows)
        hv_b = jnp.sum(keys_pad * prod, axis=0, keepdims=True)        # (1, D)

        # ---- dot similarity vs. normalized centroids + 2-class softmax ----
        # softmax([s0, s1])[1] == sigmoid(s1 - s0) == sigmoid(hv . (c1 - c0));
        # the centroid normalization/difference is loop-invariant and lives in
        # the wrapper, so only one lane reduce + sigmoid remains per row.
        logit = jnp.sum(hv_b * cdiff, axis=1, keepdims=True)          # (1, 1)
        o_ref[pl.ds(b, 1), :] = 1.0 / (1.0 + jnp.exp(-logit))


def _value_to_index(value, low, high, n):
    # torchhd functional.value_to_index: round + clamp into [0, n-1]
    idx = jnp.round((value - low) / (high - low) * (n - 1))
    return jnp.clip(idx, 0, n - 1).astype(jnp.int32)


def _level_indices(x):
    # (B, F) int32 indices into the merged [motion ; hr] level table.
    # The clip above is what keeps the in-kernel HBM row DMAs in bounds.
    mot = x[:, 0, :F - 1]
    hr = x[:, 0, F - 1]
    return jnp.concatenate(
        [_value_to_index(mot, -3.0, 3.0, MOTION_LEVELS),
         _value_to_index(hr, 50.0, 200.0, HR_LEVELS)[:, None] + MOTION_LEVELS],
        axis=1)


@jax.jit
def hdc_forward(x, level_tbl, keys, centroid):
    idx = _level_indices(x)                                          # (B, F) int32

    # Loop-invariant prep hoisted out of the kernel:
    #   * zero key rows >= N_WIN so the kernel needs no window/key slices,
    #   * L2-normalize centroid rows (normalized_inference) and take the row
    #     difference so the 2-class softmax folds into a per-row sigmoid.
    keys_pad = jnp.where(jnp.arange(F)[:, None] < N_WIN, keys, 0.0)  # (F, D) f32
    norms = jnp.sqrt(jnp.sum(centroid * centroid, axis=1, keepdims=True))
    cent_norm = centroid / jnp.maximum(norms, 1e-12)                 # (2, D)
    cdiff = (cent_norm[1] - cent_norm[0])[None, :]                   # (1, D)

    probs = pl.pallas_call(
        _hdc_kernel,
        out_shape=jax.ShapeDtypeStruct((B, 1), jnp.float32),
        grid_spec=pltpu.PrefetchScalarGridSpec(
            num_scalar_prefetch=1,
            grid=(1,),                                               # single invocation
            in_specs=[
                pl.BlockSpec(memory_space=pl.ANY),                   # level table stays in HBM
                pl.BlockSpec((F, D), lambda i, s: (0, 0)),           # zero-padded keys (16 KB)
                pl.BlockSpec((1, D), lambda i, s: (0, 0)),           # normalized centroid diff
            ],
            out_specs=pl.BlockSpec((B, 1), lambda i, s: (0, 0)),
            scratch_shapes=[
                pltpu.VMEM((B * F, D), jnp.float32),                 # gathered rows (~32 KB)
                pltpu.SemaphoreType.DMA((B * F,)),                   # one sem per row DMA
            ],
        ),
        compiler_params=pltpu.CompilerParams(
            dimension_semantics=("arbitrary",)),
    )(idx, level_tbl, keys_pad, cdiff)

    return probs[:, 0]                                               # (B,)


def hdc_reference(x, level_tbl, keys, centroid):
    # pure-JAX reference of the same forward pass (for validation)
    idx = _level_indices(x)
    enc = level_tbl[idx]                                             # (B, F, D)
    w = jnp.roll(enc[:, 1:1 + N_WIN, :], NGRAMS - 1, axis=2)
    for j in range(1, NGRAMS):
        w = w * jnp.roll(enc[:, 1 + j:1 + j + N_WIN, :], NGRAMS - 1 - j, axis=2)
    hv = jnp.sum(keys[None, :N_WIN, :] * w, axis=1)                  # (B, D)
    norms = jnp.sqrt(jnp.sum(centroid ** 2, axis=1, keepdims=True))
    wn = centroid / jnp.maximum(norms, 1e-12)
    sim = hv @ wn.T
    return jax.nn.softmax(sim, axis=1)[:, 1]


def _pm_one(key, shape):
    return jnp.where(jax.random.bernoulli(key, 0.5, shape), 1.0, -1.0).astype(jnp.float32)


if __name__ == "__main__":
    key = jax.random.PRNGKey(0)
    k_x1, k_x2, k_keys, k_mot, k_hr, k_cent = jax.random.split(key, 6)

    # inputs: 15 motion channels in [-3, 3], 1 heart-rate channel in [50, 200]
    motion_x = jax.random.uniform(k_x1, (B, 1, F - 1), minval=-3.0, maxval=3.0)
    hr_x = jax.random.uniform(k_x2, (B, 1, 1), minval=50.0, maxval=200.0)
    x = jnp.concatenate([motion_x, hr_x], axis=-1).astype(jnp.float32)

    # deterministic synthetic parameters (MAP hypervectors are +/-1)
    keys = _pm_one(k_keys, (F, D))
    motion_tbl = _pm_one(k_mot, (MOTION_LEVELS, D))
    hr_tbl = _pm_one(k_hr, (HR_LEVELS, D))
    # merged level table, built once at parameter-setup time (module "init");
    # HR indices are offset by MOTION_LEVELS in _level_indices.
    level_tbl = jnp.concatenate([motion_tbl, hr_tbl], axis=0)        # (3200, D)
    # torchhd models.Centroid initializes to zeros (untrained); use random
    # weights so the similarity/softmax path is non-trivial.
    centroid = jax.random.normal(k_cent, (NUM_CLASSES, D), dtype=jnp.float32)

    out = jax.block_until_ready(hdc_forward(x, level_tbl, keys, centroid))
    ref = hdc_reference(x, level_tbl, keys, centroid)
    assert out.shape == (B,)
    assert jnp.allclose(out, ref, atol=1e-3, rtol=1e-3), (out, ref)
    print("KERNEL_OK")
</pallas_src>

<mosaic_0001>
module attributes {stable_mosaic.version = 11 : i64} {
  func.func @_hdc_kernel(%arg0: i32, %arg1: memref<2x16xi32, #tpu.memory_space<smem>>, %arg2: memref<3200x256xf32, #tpu.memory_space<any>>, %arg3: memref<16x256xf32, #tpu.memory_space<vmem>>, %arg4: memref<1x256xf32, #tpu.memory_space<vmem>>, %arg5: memref<2x1xf32, #tpu.memory_space<vmem>>, %arg6: memref<32x256xf32, #tpu.memory_space<vmem>>, %arg7: memref<32x!tpu.dma_semaphore, #tpu.memory_space<semaphore_mem>>) attributes {dimension_semantics = [#tpu.dimension_semantics<arbitrary>], iteration_bounds = array<i64: 1>, scalar_prefetch = 1 : i64, scratch_operands = 2 : i64, tpu.core_type = #tpu.core_type<tc>, window_params = [{}, {pipeline_mode = #tpu.pipeline_mode<synchronous>, transform_indices = @transform_1, window_bounds = array<i64: 16, 256>}, {pipeline_mode = #tpu.pipeline_mode<synchronous>, transform_indices = @transform_2, window_bounds = array<i64: 1, 256>}, {pipeline_mode = #tpu.pipeline_mode<synchronous>, transform_indices = @transform_3, window_bounds = array<i64: 2, 1>}]} {
    %c0 = arith.constant 0 : index
    %c0_0 = arith.constant 0 : index
    %0 = memref.load %arg1[%c0, %c0_0] : memref<2x16xi32, #tpu.memory_space<smem>>
    %c0_i32 = arith.constant 0 : i32
    %c0_i32_1 = arith.constant 0 : i32
    %1 = tpu.memref_slice %arg2[%0, %c0_i32_1] : memref<3200x256xf32, #tpu.memory_space<any>> -> memref<1x256xf32, #tpu.memory_space<any>>
    %c0_i32_2 = arith.constant 0 : i32
    %c0_i32_3 = arith.constant 0 : i32
    %2 = tpu.memref_slice %arg6[%c0_i32_2, %c0_i32_3] : memref<32x256xf32, #tpu.memory_space<vmem>> -> memref<1x256xf32, #tpu.memory_space<vmem>>
    %3 = tpu.memref_slice %arg7[%c0_i32] : memref<32x!tpu.dma_semaphore, #tpu.memory_space<semaphore_mem>> -> memref<1x!tpu.dma_semaphore, #tpu.memory_space<semaphore_mem>>
    %4 = tpu.memref_squeeze %3 : memref<1x!tpu.dma_semaphore, #tpu.memory_space<semaphore_mem>> -> memref<!tpu.dma_semaphore, #tpu.memory_space<semaphore_mem>>
    tpu.enqueue_dma source(%1 : memref<1x256xf32, #tpu.memory_space<any>>) target(%2 : memref<1x256xf32, #tpu.memory_space<vmem>>) target_semaphore(%4 : memref<!tpu.dma_semaphore, #tpu.memory_space<semaphore_mem>>)
    %c0_4 = arith.constant 0 : index
    %c1 = arith.constant 1 : index
    %5 = memref.load %arg1[%c0_4, %c1] : memref<2x16xi32, #tpu.memory_space<smem>>
    %c1_i32 = arith.constant 1 : i32
    %c0_i32_5 = arith.constant 0 : i32
    %6 = tpu.memref_slice %arg2[%5, %c0_i32_5] : memref<3200x256xf32, #tpu.memory_space<any>> -> memref<1x256xf32, #tpu.memory_space<any>>
    %c1_i32_6 = arith.constant 1 : i32
    %c0_i32_7 = arith.constant 0 : i32
    %7 = tpu.memref_slice %arg6[%c1_i32_6, %c0_i32_7] : memref<32x256xf32, #tpu.memory_space<vmem>> -> memref<1x256xf32, #tpu.memory_space<vmem>>
    %8 = tpu.memref_slice %arg7[%c1_i32] : memref<32x!tpu.dma_semaphore, #tpu.memory_space<semaphore_mem>> -> memref<1x!tpu.dma_semaphore, #tpu.memory_space<semaphore_mem>>
    %9 = tpu.memref_squeeze %8 : memref<1x!tpu.dma_semaphore, #tpu.memory_space<semaphore_mem>> -> memref<!tpu.dma_semaphore, #tpu.memory_space<semaphore_mem>>
    tpu.enqueue_dma source(%6 : memref<1x256xf32, #tpu.memory_space<any>>) target(%7 : memref<1x256xf32, #tpu.memory_space<vmem>>) target_semaphore(%9 : memref<!tpu.dma_semaphore, #tpu.memory_space<semaphore_mem>>)
    %c0_8 = arith.constant 0 : index
    %c2 = arith.constant 2 : index
    %10 = memref.load %arg1[%c0_8, %c2] : memref<2x16xi32, #tpu.memory_space<smem>>
    %c2_i32 = arith.constant 2 : i32
    %c0_i32_9 = arith.constant 0 : i32
    %11 = tpu.memref_slice %arg2[%10, %c0_i32_9] : memref<3200x256xf32, #tpu.memory_space<any>> -> memref<1x256xf32, #tpu.memory_space<any>>
    %c2_i32_10 = arith.constant 2 : i32
    %c0_i32_11 = arith.constant 0 : i32
    %12 = tpu.memref_slice %arg6[%c2_i32_10, %c0_i32_11] : memref<32x256xf32, #tpu.memory_space<vmem>> -> memref<1x256xf32, #tpu.memory_space<vmem>>
    %13 = tpu.memref_slice %arg7[%c2_i32] : memref<32x!tpu.dma_semaphore, #tpu.memory_space<semaphore_mem>> -> memref<1x!tpu.dma_semaphore, #tpu.memory_space<semaphore_mem>>
    %14 = tpu.memref_squeeze %13 : memref<1x!tpu.dma_semaphore, #tpu.memory_space<semaphore_mem>> -> memref<!tpu.dma_semaphore, #tpu.memory_space<semaphore_mem>>
    tpu.enqueue_dma source(%11 : memref<1x256xf32, #tpu.memory_space<any>>) target(%12 : memref<1x256xf32, #tpu.memory_space<vmem>>) target_semaphore(%14 : memref<!tpu.dma_semaphore, #tpu.memory_space<semaphore_mem>>)
    %c0_12 = arith.constant 0 : index
    %c3 = arith.constant 3 : index
    %15 = memref.load %arg1[%c0_12, %c3] : memref<2x16xi32, #tpu.memory_space<smem>>
    %c3_i32 = arith.constant 3 : i32
    %c0_i32_13 = arith.constant 0 : i32
    %16 = tpu.memref_slice %arg2[%15, %c0_i32_13] : memref<3200x256xf32, #tpu.memory_space<any>> -> memref<1x256xf32, #tpu.memory_space<any>>
    %c3_i32_14 = arith.constant 3 : i32
    %c0_i32_15 = arith.constant 0 : i32
    %17 = tpu.memref_slice %arg6[%c3_i32_14, %c0_i32_15] : memref<32x256xf32, #tpu.memory_space<vmem>> -> memref<1x256xf32, #tpu.memory_space<vmem>>
    %18 = tpu.memref_slice %arg7[%c3_i32] : memref<32x!tpu.dma_semaphore, #tpu.memory_space<semaphore_mem>> -> memref<1x!tpu.dma_semaphore, #tpu.memory_space<semaphore_mem>>
    %19 = tpu.memref_squeeze %18 : memref<1x!tpu.dma_semaphore, #tpu.memory_space<semaphore_mem>> -> memref<!tpu.dma_semaphore, #tpu.memory_space<semaphore_mem>>
    tpu.enqueue_dma source(%16 : memref<1x256xf32, #tpu.memory_space<any>>) target(%17 : memref<1x256xf32, #tpu.memory_space<vmem>>) target_semaphore(%19 : memref<!tpu.dma_semaphore, #tpu.memory_space<semaphore_mem>>)
    %c0_16 = arith.constant 0 : index
    %c4 = arith.constant 4 : index
    %20 = memref.load %arg1[%c0_16, %c4] : memref<2x16xi32, #tpu.memory_space<smem>>
    %c4_i32 = arith.constant 4 : i32
    %c0_i32_17 = arith.constant 0 : i32
    %21 = tpu.memref_slice %arg2[%20, %c0_i32_17] : memref<3200x256xf32, #tpu.memory_space<any>> -> memref<1x256xf32, #tpu.memory_space<any>>
    %c4_i32_18 = arith.constant 4 : i32
    %c0_i32_19 = arith.constant 0 : i32
    %22 = tpu.memref_slice %arg6[%c4_i32_18, %c0_i32_19] : memref<32x256xf32, #tpu.memory_space<vmem>> -> memref<1x256xf32, #tpu.memory_space<vmem>>
    %23 = tpu.memref_slice %arg7[%c4_i32] : memref<32x!tpu.dma_semaphore, #tpu.memory_space<semaphore_mem>> -> memref<1x!tpu.dma_semaphore, #tpu.memory_space<semaphore_mem>>
    %24 = tpu.memref_squeeze %23 : memref<1x!tpu.dma_semaphore, #tpu.memory_space<semaphore_mem>> -> memref<!tpu.dma_semaphore, #tpu.memory_space<semaphore_mem>>
    tpu.enqueue_dma source(%21 : memref<1x256xf32, #tpu.memory_space<any>>) target(%22 : memref<1x256xf32, #tpu.memory_space<vmem>>) target_semaphore(%24 : memref<!tpu.dma_semaphore, #tpu.memory_space<semaphore_mem>>)
    %c0_20 = arith.constant 0 : index
    %c5 = arith.constant 5 : index
    %25 = memref.load %arg1[%c0_20, %c5] : memref<2x16xi32, #tpu.memory_space<smem>>
    %c5_i32 = arith.constant 5 : i32
    %c0_i32_21 = arith.constant 0 : i32
    %26 = tpu.memref_slice %arg2[%25, %c0_i32_21] : memref<3200x256xf32, #tpu.memory_space<any>> -> memref<1x256xf32, #tpu.memory_space<any>>
    %c5_i32_22 = arith.constant 5 : i32
    %c0_i32_23 = arith.constant 0 : i32
    %27 = tpu.memref_slice %arg6[%c5_i32_22, %c0_i32_23] : memref<32x256xf32, #tpu.memory_space<vmem>> -> memref<1x256xf32, #tpu.memory_space<vmem>>
    %28 = tpu.memref_slice %arg7[%c5_i32] : memref<32x!tpu.dma_semaphore, #tpu.memory_space<semaphore_mem>> -> memref<1x!tpu.dma_semaphore, #tpu.memory_space<semaphore_mem>>
    %29 = tpu.memref_squeeze %28 : memref<1x!tpu.dma_semaphore, #tpu.memory_space<semaphore_mem>> -> memref<!tpu.dma_semaphore, #tpu.memory_space<semaphore_mem>>
    tpu.enqueue_dma source(%26 : memref<1x256xf32, #tpu.memory_space<any>>) target(%27 : memref<1x256xf32, #tpu.memory_space<vmem>>) target_semaphore(%29 : memref<!tpu.dma_semaphore, #tpu.memory_space<semaphore_mem>>)
    %c0_24 = arith.constant 0 : index
    %c6 = arith.constant 6 : index
    %30 = memref.load %arg1[%c0_24, %c6] : memref<2x16xi32, #tpu.memory_space<smem>>
    %c6_i32 = arith.constant 6 : i32
    %c0_i32_25 = arith.constant 0 : i32
    %31 = tpu.memref_slice %arg2[%30, %c0_i32_25] : memref<3200x256xf32, #tpu.memory_space<any>> -> memref<1x256xf32, #tpu.memory_space<any>>
    %c6_i32_26 = arith.constant 6 : i32
    %c0_i32_27 = arith.constant 0 : i32
    %32 = tpu.memref_slice %arg6[%c6_i32_26, %c0_i32_27] : memref<32x256xf32, #tpu.memory_space<vmem>> -> memref<1x256xf32, #tpu.memory_space<vmem>>
    %33 = tpu.memref_slice %arg7[%c6_i32] : memref<32x!tpu.dma_semaphore, #tpu.memory_space<semaphore_mem>> -> memref<1x!tpu.dma_semaphore, #tpu.memory_space<semaphore_mem>>
    %34 = tpu.memref_squeeze %33 : memref<1x!tpu.dma_semaphore, #tpu.memory_space<semaphore_mem>> -> memref<!tpu.dma_semaphore, #tpu.memory_space<semaphore_mem>>
    tpu.enqueue_dma source(%31 : memref<1x256xf32, #tpu.memory_space<any>>) target(%32 : memref<1x256xf32, #tpu.memory_space<vmem>>) target_semaphore(%34 : memref<!tpu.dma_semaphore, #tpu.memory_space<semaphore_mem>>)
    %c0_28 = arith.constant 0 : index
    %c7 = arith.constant 7 : index
    %35 = memref.load %arg1[%c0_28, %c7] : memref<2x16xi32, #tpu.memory_space<smem>>
    %c7_i32 = arith.constant 7 : i32
    %c0_i32_29 = arith.constant 0 : i32
    %36 = tpu.memref_slice %arg2[%35, %c0_i32_29] : memref<3200x256xf32, #tpu.memory_space<any>> -> memref<1x256xf32, #tpu.memory_space<any>>
    %c7_i32_30 = arith.constant 7 : i32
    %c0_i32_31 = arith.constant 0 : i32
    %37 = tpu.memref_slice %arg6[%c7_i32_30, %c0_i32_31] : memref<32x256xf32, #tpu.memory_space<vmem>> -> memref<1x256xf32, #tpu.memory_space<vmem>>
    %38 = tpu.memref_slice %arg7[%c7_i32] : memref<32x!tpu.dma_semaphore, #tpu.memory_space<semaphore_mem>> -> memref<1x!tpu.dma_semaphore, #tpu.memory_space<semaphore_mem>>
    %39 = tpu.memref_squeeze %38 : memref<1x!tpu.dma_semaphore, #tpu.memory_space<semaphore_mem>> -> memref<!tpu.dma_semaphore, #tpu.memory_space<semaphore_mem>>
    tpu.enqueue_dma source(%36 : memref<1x256xf32, #tpu.memory_space<any>>) target(%37 : memref<1x256xf32, #tpu.memory_space<vmem>>) target_semaphore(%39 : memref<!tpu.dma_semaphore, #tpu.memory_space<semaphore_mem>>)
    %c0_32 = arith.constant 0 : index
    %c8 = arith.constant 8 : index
    %40 = memref.load %arg1[%c0_32, %c8] : memref<2x16xi32, #tpu.memory_space<smem>>
    %c8_i32 = arith.constant 8 : i32
    %c0_i32_33 = arith.constant 0 : i32
    %41 = tpu.memref_slice %arg2[%40, %c0_i32_33] : memref<3200x256xf32, #tpu.memory_space<any>> -> memref<1x256xf32, #tpu.memory_space<any>>
    %c8_i32_34 = arith.constant 8 : i32
    %c0_i32_35 = arith.constant 0 : i32
    %42 = tpu.memref_slice %arg6[%c8_i32_34, %c0_i32_35] : memref<32x256xf32, #tpu.memory_space<vmem>> -> memref<1x256xf32, #tpu.memory_space<vmem>>
    %43 = tpu.memref_slice %arg7[%c8_i32] : memref<32x!tpu.dma_semaphore, #tpu.memory_space<semaphore_mem>> -> memref<1x!tpu.dma_semaphore, #tpu.memory_space<semaphore_mem>>
    %44 = tpu.memref_squeeze %43 : memref<1x!tpu.dma_semaphore, #tpu.memory_space<semaphore_mem>> -> memref<!tpu.dma_semaphore, #tpu.memory_space<semaphore_mem>>
    tpu.enqueue_dma source(%41 : memref<1x256xf32, #tpu.memory_space<any>>) target(%42 : memref<1x256xf32, #tpu.memory_space<vmem>>) target_semaphore(%44 : memref<!tpu.dma_semaphore, #tpu.memory_space<semaphore_mem>>)
    %c0_36 = arith.constant 0 : index
    %c9 = arith.constant 9 : index
    %45 = memref.load %arg1[%c0_36, %c9] : memref<2x16xi32, #tpu.memory_space<smem>>
    %c9_i32 = arith.constant 9 : i32
    %c0_i32_37 = arith.constant 0 : i32
    %46 = tpu.memref_slice %arg2[%45, %c0_i32_37] : memref<3200x256xf32, #tpu.memory_space<any>> -> memref<1x256xf32, #tpu.memory_space<any>>
    %c9_i32_38 = arith.constant 9 : i32
    %c0_i32_39 = arith.constant 0 : i32
    %47 = tpu.memref_slice %arg6[%c9_i32_38, %c0_i32_39] : memref<32x256xf32, #tpu.memory_space<vmem>> -> memref<1x256xf32, #tpu.memory_space<vmem>>
    %48 = tpu.memref_slice %arg7[%c9_i32] : memref<32x!tpu.dma_semaphore, #tpu.memory_space<semaphore_mem>> -> memref<1x!tpu.dma_semaphore, #tpu.memory_space<semaphore_mem>>
    %49 = tpu.memref_squeeze %48 : memref<1x!tpu.dma_semaphore, #tpu.memory_space<semaphore_mem>> -> memref<!tpu.dma_semaphore, #tpu.memory_space<semaphore_mem>>
    tpu.enqueue_dma source(%46 : memref<1x256xf32, #tpu.memory_space<any>>) target(%47 : memref<1x256xf32, #tpu.memory_space<vmem>>) target_semaphore(%49 : memref<!tpu.dma_semaphore, #tpu.memory_space<semaphore_mem>>)
    %c0_40 = arith.constant 0 : index
    %c10 = arith.constant 10 : index
    %50 = memref.load %arg1[%c0_40, %c10] : memref<2x16xi32, #tpu.memory_space<smem>>
    %c10_i32 = arith.constant 10 : i32
    %c0_i32_41 = arith.constant 0 : i32
    %51 = tpu.memref_slice %arg2[%50, %c0_i32_41] : memref<3200x256xf32, #tpu.memory_space<any>> -> memref<1x256xf32, #tpu.memory_space<any>>
    %c10_i32_42 = arith.constant 10 : i32
    %c0_i32_43 = arith.constant 0 : i32
    %52 = tpu.memref_slice %arg6[%c10_i32_42, %c0_i32_43] : memref<32x256xf32, #tpu.memory_space<vmem>> -> memref<1x256xf32, #tpu.memory_space<vmem>>
    %53 = tpu.memref_slice %arg7[%c10_i32] : memref<32x!tpu.dma_semaphore, #tpu.memory_space<semaphore_mem>> -> memref<1x!tpu.dma_semaphore, #tpu.memory_space<semaphore_mem>>
    %54 = tpu.memref_squeeze %53 : memref<1x!tpu.dma_semaphore, #tpu.memory_space<semaphore_mem>> -> memref<!tpu.dma_semaphore, #tpu.memory_space<semaphore_mem>>
    tpu.enqueue_dma source(%51 : memref<1x256xf32, #tpu.memory_space<any>>) target(%52 : memref<1x256xf32, #tpu.memory_space<vmem>>) target_semaphore(%54 : memref<!tpu.dma_semaphore, #tpu.memory_space<semaphore_mem>>)
    %c0_44 = arith.constant 0 : index
    %c11 = arith.constant 11 : index
    %55 = memref.load %arg1[%c0_44, %c11] : memref<2x16xi32, #tpu.memory_space<smem>>
    %c11_i32 = arith.constant 11 : i32
    %c0_i32_45 = arith.constant 0 : i32
    %56 = tpu.memref_slice %arg2[%55, %c0_i32_45] : memref<3200x256xf32, #tpu.memory_space<any>> -> memref<1x256xf32, #tpu.memory_space<any>>
    %c11_i32_46 = arith.constant 11 : i32
    %c0_i32_47 = arith.constant 0 : i32
    %57 = tpu.memref_slice %arg6[%c11_i32_46, %c0_i32_47] : memref<32x256xf32, #tpu.memory_space<vmem>> -> memref<1x256xf32, #tpu.memory_space<vmem>>
    %58 = tpu.memref_slice %arg7[%c11_i32] : memref<32x!tpu.dma_semaphore, #tpu.memory_space<semaphore_mem>> -> memref<1x!tpu.dma_semaphore, #tpu.memory_space<semaphore_mem>>
    %59 = tpu.memref_squeeze %58 : memref<1x!tpu.dma_semaphore, #tpu.memory_space<semaphore_mem>> -> memref<!tpu.dma_semaphore, #tpu.memory_space<semaphore_mem>>
    tpu.enqueue_dma source(%56 : memref<1x256xf32, #tpu.memory_space<any>>) target(%57 : memref<1x256xf32, #tpu.memory_space<vmem>>) target_semaphore(%59 : memref<!tpu.dma_semaphore, #tpu.memory_space<semaphore_mem>>)
    %c0_48 = arith.constant 0 : index
    %c12 = arith.constant 12 : index
    %60 = memref.load %arg1[%c0_48, %c12] : memref<2x16xi32, #tpu.memory_space<smem>>
    %c12_i32 = arith.constant 12 : i32
    %c0_i32_49 = arith.constant 0 : i32
    %61 = tpu.memref_slice %arg2[%60, %c0_i32_49] : memref<3200x256xf32, #tpu.memory_space<any>> -> memref<1x256xf32, #tpu.memory_space<any>>
    %c12_i32_50 = arith.constant 12 : i32
    %c0_i32_51 = arith.constant 0 : i32
    %62 = tpu.memref_slice %arg6[%c12_i32_50, %c0_i32_51] : memref<32x256xf32, #tpu.memory_space<vmem>> -> memref<1x256xf32, #tpu.memory_space<vmem>>
    %63 = tpu.memref_slice %arg7[%c12_i32] : memref<32x!tpu.dma_semaphore, #tpu.memory_space<semaphore_mem>> -> memref<1x!tpu.dma_semaphore, #tpu.memory_space<semaphore_mem>>
    %64 = tpu.memref_squeeze %63 : memref<1x!tpu.dma_semaphore, #tpu.memory_space<semaphore_mem>> -> memref<!tpu.dma_semaphore, #tpu.memory_space<semaphore_mem>>
    tpu.enqueue_dma source(%61 : memref<1x256xf32, #tpu.memory_space<any>>) target(%62 : memref<1x256xf32, #tpu.memory_space<vmem>>) target_semaphore(%64 : memref<!tpu.dma_semaphore, #tpu.memory_space<semaphore_mem>>)
    %c0_52 = arith.constant 0 : index
    %c13 = arith.constant 13 : index
    %65 = memref.load %arg1[%c0_52, %c13] : memref<2x16xi32, #tpu.memory_space<smem>>
    %c13_i32 = arith.constant 13 : i32
    %c0_i32_53 = arith.constant 0 : i32
    %66 = tpu.memref_slice %arg2[%65, %c0_i32_53] : memref<3200x256xf32, #tpu.memory_space<any>> -> memref<1x256xf32, #tpu.memory_space<any>>
    %c13_i32_54 = arith.constant 13 : i32
    %c0_i32_55 = arith.constant 0 : i32
    %67 = tpu.memref_slice %arg6[%c13_i32_54, %c0_i32_55] : memref<32x256xf32, #tpu.memory_space<vmem>> -> memref<1x256xf32, #tpu.memory_space<vmem>>
    %68 = tpu.memref_slice %arg7[%c13_i32] : memref<32x!tpu.dma_semaphore, #tpu.memory_space<semaphore_mem>> -> memref<1x!tpu.dma_semaphore, #tpu.memory_space<semaphore_mem>>
    %69 = tpu.memref_squeeze %68 : memref<1x!tpu.dma_semaphore, #tpu.memory_space<semaphore_mem>> -> memref<!tpu.dma_semaphore, #tpu.memory_space<semaphore_mem>>
    tpu.enqueue_dma source(%66 : memref<1x256xf32, #tpu.memory_space<any>>) target(%67 : memref<1x256xf32, #tpu.memory_space<vmem>>) target_semaphore(%69 : memref<!tpu.dma_semaphore, #tpu.memory_space<semaphore_mem>>)
    %c0_56 = arith.constant 0 : index
    %c14 = arith.constant 14 : index
    %70 = memref.load %arg1[%c0_56, %c14] : memref<2x16xi32, #tpu.memory_space<smem>>
    %c14_i32 = arith.constant 14 : i32
    %c0_i32_57 = arith.constant 0 : i32
    %71 = tpu.memref_slice %arg2[%70, %c0_i32_57] : memref<3200x256xf32, #tpu.memory_space<any>> -> memref<1x256xf32, #tpu.memory_space<any>>
    %c14_i32_58 = arith.constant 14 : i32
    %c0_i32_59 = arith.constant 0 : i32
    %72 = tpu.memref_slice %arg6[%c14_i32_58, %c0_i32_59] : memref<32x256xf32, #tpu.memory_space<vmem>> -> memref<1x256xf32, #tpu.memory_space<vmem>>
    %73 = tpu.memref_slice %arg7[%c14_i32] : memref<32x!tpu.dma_semaphore, #tpu.memory_space<semaphore_mem>> -> memref<1x!tpu.dma_semaphore, #tpu.memory_space<semaphore_mem>>
    %74 = tpu.memref_squeeze %73 : memref<1x!tpu.dma_semaphore, #tpu.memory_space<semaphore_mem>> -> memref<!tpu.dma_semaphore, #tpu.memory_space<semaphore_mem>>
    tpu.enqueue_dma source(%71 : memref<1x256xf32, #tpu.memory_space<any>>) target(%72 : memref<1x256xf32, #tpu.memory_space<vmem>>) target_semaphore(%74 : memref<!tpu.dma_semaphore, #tpu.memory_space<semaphore_mem>>)
    %c0_60 = arith.constant 0 : index
    %c15 = arith.constant 15 : index
    %75 = memref.load %arg1[%c0_60, %c15] : memref<2x16xi32, #tpu.memory_space<smem>>
    %c15_i32 = arith.constant 15 : i32
    %c0_i32_61 = arith.constant 0 : i32
    %76 = tpu.memref_slice %arg2[%75, %c0_i32_61] : memref<3200x256xf32, #tpu.memory_space<any>> -> memref<1x256xf32, #tpu.memory_space<any>>
    %c15_i32_62 = arith.constant 15 : i32
    %c0_i32_63 = arith.constant 0 : i32
    %77 = tpu.memref_slice %arg6[%c15_i32_62, %c0_i32_63] : memref<32x256xf32, #tpu.memory_space<vmem>> -> memref<1x256xf32, #tpu.memory_space<vmem>>
    %78 = tpu.memref_slice %arg7[%c15_i32] : memref<32x!tpu.dma_semaphore, #tpu.memory_space<semaphore_mem>> -> memref<1x!tpu.dma_semaphore, #tpu.memory_space<semaphore_mem>>
    %79 = tpu.memref_squeeze %78 : memref<1x!tpu.dma_semaphore, #tpu.memory_space<semaphore_mem>> -> memref<!tpu.dma_semaphore, #tpu.memory_space<semaphore_mem>>
    tpu.enqueue_dma source(%76 : memref<1x256xf32, #tpu.memory_space<any>>) target(%77 : memref<1x256xf32, #tpu.memory_space<vmem>>) target_semaphore(%79 : memref<!tpu.dma_semaphore, #tpu.memory_space<semaphore_mem>>)
    %c1_64 = arith.constant 1 : index
    %c0_65 = arith.constant 0 : index
    %80 = memref.load %arg1[%c1_64, %c0_65] : memref<2x16xi32, #tpu.memory_space<smem>>
    %c16_i32 = arith.constant 16 : i32
    %c0_i32_66 = arith.constant 0 : i32
    %81 = tpu.memref_slice %arg2[%80, %c0_i32_66] : memref<3200x256xf32, #tpu.memory_space<any>> -> memref<1x256xf32, #tpu.memory_space<any>>
    %c16_i32_67 = arith.constant 16 : i32
    %c0_i32_68 = arith.constant 0 : i32
    %82 = tpu.memref_slice %arg6[%c16_i32_67, %c0_i32_68] : memref<32x256xf32, #tpu.memory_space<vmem>> -> memref<1x256xf32, #tpu.memory_space<vmem>>
    %83 = tpu.memref_slice %arg7[%c16_i32] : memref<32x!tpu.dma_semaphore, #tpu.memory_space<semaphore_mem>> -> memref<1x!tpu.dma_semaphore, #tpu.memory_space<semaphore_mem>>
    %84 = tpu.memref_squeeze %83 : memref<1x!tpu.dma_semaphore, #tpu.memory_space<semaphore_mem>> -> memref<!tpu.dma_semaphore, #tpu.memory_space<semaphore_mem>>
    tpu.enqueue_dma source(%81 : memref<1x256xf32, #tpu.memory_space<any>>) target(%82 : memref<1x256xf32, #tpu.memory_space<vmem>>) target_semaphore(%84 : memref<!tpu.dma_semaphore, #tpu.memory_space<semaphore_mem>>)
    %c1_69 = arith.constant 1 : index
    %c1_70 = arith.constant 1 : index
    %85 = memref.load %arg1[%c1_69, %c1_70] : memref<2x16xi32, #tpu.memory_space<smem>>
    %c17_i32 = arith.constant 17 : i32
    %c0_i32_71 = arith.constant 0 : i32
    %86 = tpu.memref_slice %arg2[%85, %c0_i32_71] : memref<3200x256xf32, #tpu.memory_space<any>> -> memref<1x256xf32, #tpu.memory_space<any>>
    %c17_i32_72 = arith.constant 17 : i32
    %c0_i32_73 = arith.constant 0 : i32
    %87 = tpu.memref_slice %arg6[%c17_i32_72, %c0_i32_73] : memref<32x256xf32, #tpu.memory_space<vmem>> -> memref<1x256xf32, #tpu.memory_space<vmem>>
    %88 = tpu.memref_slice %arg7[%c17_i32] : memref<32x!tpu.dma_semaphore, #tpu.memory_space<semaphore_mem>> -> memref<1x!tpu.dma_semaphore, #tpu.memory_space<semaphore_mem>>
    %89 = tpu.memref_squeeze %88 : memref<1x!tpu.dma_semaphore, #tpu.memory_space<semaphore_mem>> -> memref<!tpu.dma_semaphore, #tpu.memory_space<semaphore_mem>>
    tpu.enqueue_dma source(%86 : memref<1x256xf32, #tpu.memory_space<any>>) target(%87 : memref<1x256xf32, #tpu.memory_space<vmem>>) target_semaphore(%89 : memref<!tpu.dma_semaphore, #tpu.memory_space<semaphore_mem>>)
    %c1_74 = arith.constant 1 : index
    %c2_75 = arith.constant 2 : index
    %90 = memref.load %arg1[%c1_74, %c2_75] : memref<2x16xi32, #tpu.memory_space<smem>>
    %c18_i32 = arith.constant 18 : i32
    %c0_i32_76 = arith.constant 0 : i32
    %91 = tpu.memref_slice %arg2[%90, %c0_i32_76] : memref<3200x256xf32, #tpu.memory_space<any>> -> memref<1x256xf32, #tpu.memory_space<any>>
    %c18_i32_77 = arith.constant 18 : i32
    %c0_i32_78 = arith.constant 0 : i32
    %92 = tpu.memref_slice %arg6[%c18_i32_77, %c0_i32_78] : memref<32x256xf32, #tpu.memory_space<vmem>> -> memref<1x256xf32, #tpu.memory_space<vmem>>
    %93 = tpu.memref_slice %arg7[%c18_i32] : memref<32x!tpu.dma_semaphore, #tpu.memory_space<semaphore_mem>> -> memref<1x!tpu.dma_semaphore, #tpu.memory_space<semaphore_mem>>
    %94 = tpu.memref_squeeze %93 : memref<1x!tpu.dma_semaphore, #tpu.memory_space<semaphore_mem>> -> memref<!tpu.dma_semaphore, #tpu.memory_space<semaphore_mem>>
    tpu.enqueue_dma source(%91 : memref<1x256xf32, #tpu.memory_space<any>>) target(%92 : memref<1x256xf32, #tpu.memory_space<vmem>>) target_semaphore(%94 : memref<!tpu.dma_semaphore, #tpu.memory_space<semaphore_mem>>)
    %c1_79 = arith.constant 1 : index
    %c3_80 = arith.constant 3 : index
    %95 = memref.load %arg1[%c1_79, %c3_80] : memref<2x16xi32, #tpu.memory_space<smem>>
    %c19_i32 = arith.constant 19 : i32
    %c0_i32_81 = arith.constant 0 : i32
    %96 = tpu.memref_slice %arg2[%95, %c0_i32_81] : memref<3200x256xf32, #tpu.memory_space<any>> -> memref<1x256xf32, #tpu.memory_space<any>>
    %c19_i32_82 = arith.constant 19 : i32
    %c0_i32_83 = arith.constant 0 : i32
    %97 = tpu.memref_slice %arg6[%c19_i32_82, %c0_i32_83] : memref<32x256xf32, #tpu.memory_space<vmem>> -> memref<1x256xf32, #tpu.memory_space<vmem>>
    %98 = tpu.memref_slice %arg7[%c19_i32] : memref<32x!tpu.dma_semaphore, #tpu.memory_space<semaphore_mem>> -> memref<1x!tpu.dma_semaphore, #tpu.memory_space<semaphore_mem>>
    %99 = tpu.memref_squeeze %98 : memref<1x!tpu.dma_semaphore, #tpu.memory_space<semaphore_mem>> -> memref<!tpu.dma_semaphore, #tpu.memory_space<semaphore_mem>>
    tpu.enqueue_dma source(%96 : memref<1x256xf32, #tpu.memory_space<any>>) target(%97 : memref<1x256xf32, #tpu.memory_space<vmem>>) target_semaphore(%99 : memref<!tpu.dma_semaphore, #tpu.memory_space<semaphore_mem>>)
    %c1_84 = arith.constant 1 : index
    %c4_85 = arith.constant 4 : index
    %100 = memref.load %arg1[%c1_84, %c4_85] : memref<2x16xi32, #tpu.memory_space<smem>>
    %c20_i32 = arith.constant 20 : i32
    %c0_i32_86 = arith.constant 0 : i32
    %101 = tpu.memref_slice %arg2[%100, %c0_i32_86] : memref<3200x256xf32, #tpu.memory_space<any>> -> memref<1x256xf32, #tpu.memory_space<any>>
    %c20_i32_87 = arith.constant 20 : i32
    %c0_i32_88 = arith.constant 0 : i32
    %102 = tpu.memref_slice %arg6[%c20_i32_87, %c0_i32_88] : memref<32x256xf32, #tpu.memory_space<vmem>> -> memref<1x256xf32, #tpu.memory_space<vmem>>
    %103 = tpu.memref_slice %arg7[%c20_i32] : memref<32x!tpu.dma_semaphore, #tpu.memory_space<semaphore_mem>> -> memref<1x!tpu.dma_semaphore, #tpu.memory_space<semaphore_mem>>
    %104 = tpu.memref_squeeze %103 : memref<1x!tpu.dma_semaphore, #tpu.memory_space<semaphore_mem>> -> memref<!tpu.dma_semaphore, #tpu.memory_space<semaphore_mem>>
    tpu.enqueue_dma source(%101 : memref<1x256xf32, #tpu.memory_space<any>>) target(%102 : memref<1x256xf32, #tpu.memory_space<vmem>>) target_semaphore(%104 : memref<!tpu.dma_semaphore, #tpu.memory_space<semaphore_mem>>)
    %c1_89 = arith.constant 1 : index
    %c5_90 = arith.constant 5 : index
    %105 = memref.load %arg1[%c1_89, %c5_90] : memref<2x16xi32, #tpu.memory_space<smem>>
    %c21_i32 = arith.constant 21 : i32
    %c0_i32_91 = arith.constant 0 : i32
    %106 = tpu.memref_slice %arg2[%105, %c0_i32_91] : memref<3200x256xf32, #tpu.memory_space<any>> -> memref<1x256xf32, #tpu.memory_space<any>>
    %c21_i32_92 = arith.constant 21 : i32
    %c0_i32_93 = arith.constant 0 : i32
    %107 = tpu.memref_slice %arg6[%c21_i32_92, %c0_i32_93] : memref<32x256xf32, #tpu.memory_space<vmem>> -> memref<1x256xf32, #tpu.memory_space<vmem>>
    %108 = tpu.memref_slice %arg7[%c21_i32] : memref<32x!tpu.dma_semaphore, #tpu.memory_space<semaphore_mem>> -> memref<1x!tpu.dma_semaphore, #tpu.memory_space<semaphore_mem>>
    %109 = tpu.memref_squeeze %108 : memref<1x!tpu.dma_semaphore, #tpu.memory_space<semaphore_mem>> -> memref<!tpu.dma_semaphore, #tpu.memory_space<semaphore_mem>>
    tpu.enqueue_dma source(%106 : memref<1x256xf32, #tpu.memory_space<any>>) target(%107 : memref<1x256xf32, #tpu.memory_space<vmem>>) target_semaphore(%109 : memref<!tpu.dma_semaphore, #tpu.memory_space<semaphore_mem>>)
    %c1_94 = arith.constant 1 : index
    %c6_95 = arith.constant 6 : index
    %110 = memref.load %arg1[%c1_94, %c6_95] : memref<2x16xi32, #tpu.memory_space<smem>>
    %c22_i32 = arith.constant 22 : i32
    %c0_i32_96 = arith.constant 0 : i32
    %111 = tpu.memref_slice %arg2[%110, %c0_i32_96] : memref<3200x256xf32, #tpu.memory_space<any>> -> memref<1x256xf32, #tpu.memory_space<any>>
    %c22_i32_97 = arith.constant 22 : i32
    %c0_i32_98 = arith.constant 0 : i32
    %112 = tpu.memref_slice %arg6[%c22_i32_97, %c0_i32_98] : memref<32x256xf32, #tpu.memory_space<vmem>> -> memref<1x256xf32, #tpu.memory_space<vmem>>
    %113 = tpu.memref_slice %arg7[%c22_i32] : memref<32x!tpu.dma_semaphore, #tpu.memory_space<semaphore_mem>> -> memref<1x!tpu.dma_semaphore, #tpu.memory_space<semaphore_mem>>
    %114 = tpu.memref_squeeze %113 : memref<1x!tpu.dma_semaphore, #tpu.memory_space<semaphore_mem>> -> memref<!tpu.dma_semaphore, #tpu.memory_space<semaphore_mem>>
    tpu.enqueue_dma source(%111 : memref<1x256xf32, #tpu.memory_space<any>>) target(%112 : memref<1x256xf32, #tpu.memory_space<vmem>>) target_semaphore(%114 : memref<!tpu.dma_semaphore, #tpu.memory_space<semaphore_mem>>)
    %c1_99 = arith.constant 1 : index
    %c7_100 = arith.constant 7 : index
    %115 = memref.load %arg1[%c1_99, %c7_100] : memref<2x16xi32, #tpu.memory_space<smem>>
    %c23_i32 = arith.constant 23 : i32
    %c0_i32_101 = arith.constant 0 : i32
    %116 = tpu.memref_slice %arg2[%115, %c0_i32_101] : memref<3200x256xf32, #tpu.memory_space<any>> -> memref<1x256xf32, #tpu.memory_space<any>>
    %c23_i32_102 = arith.constant 23 : i32
    %c0_i32_103 = arith.constant 0 : i32
    %117 = tpu.memref_slice %arg6[%c23_i32_102, %c0_i32_103] : memref<32x256xf32, #tpu.memory_space<vmem>> -> memref<1x256xf32, #tpu.memory_space<vmem>>
    %118 = tpu.memref_slice %arg7[%c23_i32] : memref<32x!tpu.dma_semaphore, #tpu.memory_space<semaphore_mem>> -> memref<1x!tpu.dma_semaphore, #tpu.memory_space<semaphore_mem>>
    %119 = tpu.memref_squeeze %118 : memref<1x!tpu.dma_semaphore, #tpu.memory_space<semaphore_mem>> -> memref<!tpu.dma_semaphore, #tpu.memory_space<semaphore_mem>>
    tpu.enqueue_dma source(%116 : memref<1x256xf32, #tpu.memory_space<any>>) target(%117 : memref<1x256xf32, #tpu.memory_space<vmem>>) target_semaphore(%119 : memref<!tpu.dma_semaphore, #tpu.memory_space<semaphore_mem>>)
    %c1_104 = arith.constant 1 : index
    %c8_105 = arith.constant 8 : index
    %120 = memref.load %arg1[%c1_104, %c8_105] : memref<2x16xi32, #tpu.memory_space<smem>>
    %c24_i32 = arith.constant 24 : i32
    %c0_i32_106 = arith.constant 0 : i32
    %121 = tpu.memref_slice %arg2[%120, %c0_i32_106] : memref<3200x256xf32, #tpu.memory_space<any>> -> memref<1x256xf32, #tpu.memory_space<any>>
    %c24_i32_107 = arith.constant 24 : i32
    %c0_i32_108 = arith.constant 0 : i32
    %122 = tpu.memref_slice %arg6[%c24_i32_107, %c0_i32_108] : memref<32x256xf32, #tpu.memory_space<vmem>> -> memref<1x256xf32, #tpu.memory_space<vmem>>
    %123 = tpu.memref_slice %arg7[%c24_i32] : memref<32x!tpu.dma_semaphore, #tpu.memory_space<semaphore_mem>> -> memref<1x!tpu.dma_semaphore, #tpu.memory_space<semaphore_mem>>
    %124 = tpu.memref_squeeze %123 : memref<1x!tpu.dma_semaphore, #tpu.memory_space<semaphore_mem>> -> memref<!tpu.dma_semaphore, #tpu.memory_space<semaphore_mem>>
    tpu.enqueue_dma source(%121 : memref<1x256xf32, #tpu.memory_space<any>>) target(%122 : memref<1x256xf32, #tpu.memory_space<vmem>>) target_semaphore(%124 : memref<!tpu.dma_semaphore, #tpu.memory_space<semaphore_mem>>)
    %c1_109 = arith.constant 1 : index
    %c9_110 = arith.constant 9 : index
    %125 = memref.load %arg1[%c1_109, %c9_110] : memref<2x16xi32, #tpu.memory_space<smem>>
    %c25_i32 = arith.constant 25 : i32
    %c0_i32_111 = arith.constant 0 : i32
    %126 = tpu.memref_slice %arg2[%125, %c0_i32_111] : memref<3200x256xf32, #tpu.memory_space<any>> -> memref<1x256xf32, #tpu.memory_space<any>>
    %c25_i32_112 = arith.constant 25 : i32
    %c0_i32_113 = arith.constant 0 : i32
    %127 = tpu.memref_slice %arg6[%c25_i32_112, %c0_i32_113] : memref<32x256xf32, #tpu.memory_space<vmem>> -> memref<1x256xf32, #tpu.memory_space<vmem>>
    %128 = tpu.memref_slice %arg7[%c25_i32] : memref<32x!tpu.dma_semaphore, #tpu.memory_space<semaphore_mem>> -> memref<1x!tpu.dma_semaphore, #tpu.memory_space<semaphore_mem>>
    %129 = tpu.memref_squeeze %128 : memref<1x!tpu.dma_semaphore, #tpu.memory_space<semaphore_mem>> -> memref<!tpu.dma_semaphore, #tpu.memory_space<semaphore_mem>>
    tpu.enqueue_dma source(%126 : memref<1x256xf32, #tpu.memory_space<any>>) target(%127 : memref<1x256xf32, #tpu.memory_space<vmem>>) target_semaphore(%129 : memref<!tpu.dma_semaphore, #tpu.memory_space<semaphore_mem>>)
    %c1_114 = arith.constant 1 : index
    %c10_115 = arith.constant 10 : index
    %130 = memref.load %arg1[%c1_114, %c10_115] : memref<2x16xi32, #tpu.memory_space<smem>>
    %c26_i32 = arith.constant 26 : i32
    %c0_i32_116 = arith.constant 0 : i32
    %131 = tpu.memref_slice %arg2[%130, %c0_i32_116] : memref<3200x256xf32, #tpu.memory_space<any>> -> memref<1x256xf32, #tpu.memory_space<any>>
    %c26_i32_117 = arith.constant 26 : i32
    %c0_i32_118 = arith.constant 0 : i32
    %132 = tpu.memref_slice %arg6[%c26_i32_117, %c0_i32_118] : memref<32x256xf32, #tpu.memory_space<vmem>> -> memref<1x256xf32, #tpu.memory_space<vmem>>
    %133 = tpu.memref_slice %arg7[%c26_i32] : memref<32x!tpu.dma_semaphore, #tpu.memory_space<semaphore_mem>> -> memref<1x!tpu.dma_semaphore, #tpu.memory_space<semaphore_mem>>
    %134 = tpu.memref_squeeze %133 : memref<1x!tpu.dma_semaphore, #tpu.memory_space<semaphore_mem>> -> memref<!tpu.dma_semaphore, #tpu.memory_space<semaphore_mem>>
    tpu.enqueue_dma source(%131 : memref<1x256xf32, #tpu.memory_space<any>>) target(%132 : memref<1x256xf32, #tpu.memory_space<vmem>>) target_semaphore(%134 : memref<!tpu.dma_semaphore, #tpu.memory_space<semaphore_mem>>)
    %c1_119 = arith.constant 1 : index
    %c11_120 = arith.constant 11 : index
    %135 = memref.load %arg1[%c1_119, %c11_120] : memref<2x16xi32, #tpu.memory_space<smem>>
    %c27_i32 = arith.constant 27 : i32
    %c0_i32_121 = arith.constant 0 : i32
    %136 = tpu.memref_slice %arg2[%135, %c0_i32_121] : memref<3200x256xf32, #tpu.memory_space<any>> -> memref<1x256xf32, #tpu.memory_space<any>>
    %c27_i32_122 = arith.constant 27 : i32
    %c0_i32_123 = arith.constant 0 : i32
    %137 = tpu.memref_slice %arg6[%c27_i32_122, %c0_i32_123] : memref<32x256xf32, #tpu.memory_space<vmem>> -> memref<1x256xf32, #tpu.memory_space<vmem>>
    %138 = tpu.memref_slice %arg7[%c27_i32] : memref<32x!tpu.dma_semaphore, #tpu.memory_space<semaphore_mem>> -> memref<1x!tpu.dma_semaphore, #tpu.memory_space<semaphore_mem>>
    %139 = tpu.memref_squeeze %138 : memref<1x!tpu.dma_semaphore, #tpu.memory_space<semaphore_mem>> -> memref<!tpu.dma_semaphore, #tpu.memory_space<semaphore_mem>>
    tpu.enqueue_dma source(%136 : memref<1x256xf32, #tpu.memory_space<any>>) target(%137 : memref<1x256xf32, #tpu.memory_space<vmem>>) target_semaphore(%139 : memref<!tpu.dma_semaphore, #tpu.memory_space<semaphore_mem>>)
    %c1_124 = arith.constant 1 : index
    %c12_125 = arith.constant 12 : index
    %140 = memref.load %arg1[%c1_124, %c12_125] : memref<2x16xi32, #tpu.memory_space<smem>>
    %c28_i32 = arith.constant 28 : i32
    %c0_i32_126 = arith.constant 0 : i32
    %141 = tpu.memref_slice %arg2[%140, %c0_i32_126] : memref<3200x256xf32, #tpu.memory_space<any>> -> memref<1x256xf32, #tpu.memory_space<any>>
    %c28_i32_127 = arith.constant 28 : i32
    %c0_i32_128 = arith.constant 0 : i32
    %142 = tpu.memref_slice %arg6[%c28_i32_127, %c0_i32_128] : memref<32x256xf32, #tpu.memory_space<vmem>> -> memref<1x256xf32, #tpu.memory_space<vmem>>
    %143 = tpu.memref_slice %arg7[%c28_i32] : memref<32x!tpu.dma_semaphore, #tpu.memory_space<semaphore_mem>> -> memref<1x!tpu.dma_semaphore, #tpu.memory_space<semaphore_mem>>
    %144 = tpu.memref_squeeze %143 : memref<1x!tpu.dma_semaphore, #tpu.memory_space<semaphore_mem>> -> memref<!tpu.dma_semaphore, #tpu.memory_space<semaphore_mem>>
    tpu.enqueue_dma source(%141 : memref<1x256xf32, #tpu.memory_space<any>>) target(%142 : memref<1x256xf32, #tpu.memory_space<vmem>>) target_semaphore(%144 : memref<!tpu.dma_semaphore, #tpu.memory_space<semaphore_mem>>)
    %c1_129 = arith.constant 1 : index
    %c13_130 = arith.constant 13 : index
    %145 = memref.load %arg1[%c1_129, %c13_130] : memref<2x16xi32, #tpu.memory_space<smem>>
    %c29_i32 = arith.constant 29 : i32
    %c0_i32_131 = arith.constant 0 : i32
    %146 = tpu.memref_slice %arg2[%145, %c0_i32_131] : memref<3200x256xf32, #tpu.memory_space<any>> -> memref<1x256xf32, #tpu.memory_space<any>>
    %c29_i32_132 = arith.constant 29 : i32
    %c0_i32_133 = arith.constant 0 : i32
    %147 = tpu.memref_slice %arg6[%c29_i32_132, %c0_i32_133] : memref<32x256xf32, #tpu.memory_space<vmem>> -> memref<1x256xf32, #tpu.memory_space<vmem>>
    %148 = tpu.memref_slice %arg7[%c29_i32] : memref<32x!tpu.dma_semaphore, #tpu.memory_space<semaphore_mem>> -> memref<1x!tpu.dma_semaphore, #tpu.memory_space<semaphore_mem>>
    %149 = tpu.memref_squeeze %148 : memref<1x!tpu.dma_semaphore, #tpu.memory_space<semaphore_mem>> -> memref<!tpu.dma_semaphore, #tpu.memory_space<semaphore_mem>>
    tpu.enqueue_dma source(%146 : memref<1x256xf32, #tpu.memory_space<any>>) target(%147 : memref<1x256xf32, #tpu.memory_space<vmem>>) target_semaphore(%149 : memref<!tpu.dma_semaphore, #tpu.memory_space<semaphore_mem>>)
    %c1_134 = arith.constant 1 : index
    %c14_135 = arith.constant 14 : index
    %150 = memref.load %arg1[%c1_134, %c14_135] : memref<2x16xi32, #tpu.memory_space<smem>>
    %c30_i32 = arith.constant 30 : i32
    %c0_i32_136 = arith.constant 0 : i32
    %151 = tpu.memref_slice %arg2[%150, %c0_i32_136] : memref<3200x256xf32, #tpu.memory_space<any>> -> memref<1x256xf32, #tpu.memory_space<any>>
    %c30_i32_137 = arith.constant 30 : i32
    %c0_i32_138 = arith.constant 0 : i32
    %152 = tpu.memref_slice %arg6[%c30_i32_137, %c0_i32_138] : memref<32x256xf32, #tpu.memory_space<vmem>> -> memref<1x256xf32, #tpu.memory_space<vmem>>
    %153 = tpu.memref_slice %arg7[%c30_i32] : memref<32x!tpu.dma_semaphore, #tpu.memory_space<semaphore_mem>> -> memref<1x!tpu.dma_semaphore, #tpu.memory_space<semaphore_mem>>
    %154 = tpu.memref_squeeze %153 : memref<1x!tpu.dma_semaphore, #tpu.memory_space<semaphore_mem>> -> memref<!tpu.dma_semaphore, #tpu.memory_space<semaphore_mem>>
    tpu.enqueue_dma source(%151 : memref<1x256xf32, #tpu.memory_space<any>>) target(%152 : memref<1x256xf32, #tpu.memory_space<vmem>>) target_semaphore(%154 : memref<!tpu.dma_semaphore, #tpu.memory_space<semaphore_mem>>)
    %c1_139 = arith.constant 1 : index
    %c15_140 = arith.constant 15 : index
    %155 = memref.load %arg1[%c1_139, %c15_140] : memref<2x16xi32, #tpu.memory_space<smem>>
    %c31_i32 = arith.constant 31 : i32
    %c0_i32_141 = arith.constant 0 : i32
    %156 = tpu.memref_slice %arg2[%155, %c0_i32_141] : memref<3200x256xf32, #tpu.memory_space<any>> -> memref<1x256xf32, #tpu.memory_space<any>>
    %c31_i32_142 = arith.constant 31 : i32
    %c0_i32_143 = arith.constant 0 : i32
    %157 = tpu.memref_slice %arg6[%c31_i32_142, %c0_i32_143] : memref<32x256xf32, #tpu.memory_space<vmem>> -> memref<1x256xf32, #tpu.memory_space<vmem>>
    %158 = tpu.memref_slice %arg7[%c31_i32] : memref<32x!tpu.dma_semaphore, #tpu.memory_space<semaphore_mem>> -> memref<1x!tpu.dma_semaphore, #tpu.memory_space<semaphore_mem>>
    %159 = tpu.memref_squeeze %158 : memref<1x!tpu.dma_semaphore, #tpu.memory_space<semaphore_mem>> -> memref<!tpu.dma_semaphore, #tpu.memory_space<semaphore_mem>>
    tpu.enqueue_dma source(%156 : memref<1x256xf32, #tpu.memory_space<any>>) target(%157 : memref<1x256xf32, #tpu.memory_space<vmem>>) target_semaphore(%159 : memref<!tpu.dma_semaphore, #tpu.memory_space<semaphore_mem>>)
    %c0_144 = arith.constant 0 : index
    %c0_145 = arith.constant 0 : index
    %160 = vector.load %arg3[%c0_144, %c0_145] : memref<16x256xf32, #tpu.memory_space<vmem>>, vector<16x256xf32>
    %c0_146 = arith.constant 0 : index
    %c0_147 = arith.constant 0 : index
    %161 = vector.load %arg4[%c0_146, %c0_147] : memref<1x256xf32, #tpu.memory_space<vmem>>, vector<1x256xf32>
    %c0_i32_148 = arith.constant 0 : i32
    %c0_i32_149 = arith.constant 0 : i32
    %162 = tpu.memref_slice %arg2[%0, %c0_i32_149] : memref<3200x256xf32, #tpu.memory_space<any>> -> memref<1x256xf32, #tpu.memory_space<any>>
    %c0_i32_150 = arith.constant 0 : i32
    %c0_i32_151 = arith.constant 0 : i32
    %163 = tpu.memref_slice %arg6[%c0_i32_150, %c0_i32_151] : memref<32x256xf32, #tpu.memory_space<vmem>> -> memref<1x256xf32, #tpu.memory_space<vmem>>
    %164 = tpu.memref_slice %arg7[%c0_i32_148] : memref<32x!tpu.dma_semaphore, #tpu.memory_space<semaphore_mem>> -> memref<1x!tpu.dma_semaphore, #tpu.memory_space<semaphore_mem>>
    %165 = tpu.memref_squeeze %164 : memref<1x!tpu.dma_semaphore, #tpu.memory_space<semaphore_mem>> -> memref<!tpu.dma_semaphore, #tpu.memory_space<semaphore_mem>>
    tpu.wait_dma2 semaphore(%165 : memref<!tpu.dma_semaphore, #tpu.memory_space<semaphore_mem>>) src(%162 : memref<1x256xf32, #tpu.memory_space<any>>) dst(%163 : memref<1x256xf32, #tpu.memory_space<vmem>>)
    %c1_i32_152 = arith.constant 1 : i32
    %c0_i32_153 = arith.constant 0 : i32
    %166 = tpu.memref_slice %arg2[%5, %c0_i32_153] : memref<3200x256xf32, #tpu.memory_space<any>> -> memref<1x256xf32, #tpu.memory_space<any>>
    %c1_i32_154 = arith.constant 1 : i32
    %c0_i32_155 = arith.constant 0 : i32
    %167 = tpu.memref_slice %arg6[%c1_i32_154, %c0_i32_155] : memref<32x256xf32, #tpu.memory_space<vmem>> -> memref<1x256xf32, #tpu.memory_space<vmem>>
    %168 = tpu.memref_slice %arg7[%c1_i32_152] : memref<32x!tpu.dma_semaphore, #tpu.memory_space<semaphore_mem>> -> memref<1x!tpu.dma_semaphore, #tpu.memory_space<semaphore_mem>>
    %169 = tpu.memref_squeeze %168 : memref<1x!tpu.dma_semaphore, #tpu.memory_space<semaphore_mem>> -> memref<!tpu.dma_semaphore, #tpu.memory_space<semaphore_mem>>
    tpu.wait_dma2 semaphore(%169 : memref<!tpu.dma_semaphore, #tpu.memory_space<semaphore_mem>>) src(%166 : memref<1x256xf32, #tpu.memory_space<any>>) dst(%167 : memref<1x256xf32, #tpu.memory_space<vmem>>)
    %c2_i32_156 = arith.constant 2 : i32
    %c0_i32_157 = arith.constant 0 : i32
    %170 = tpu.memref_slice %arg2[%10, %c0_i32_157] : memref<3200x256xf32, #tpu.memory_space<any>> -> memref<1x256xf32, #tpu.memory_space<any>>
    %c2_i32_158 = arith.constant 2 : i32
    %c0_i32_159 = arith.constant 0 : i32
    %171 = tpu.memref_slice %arg6[%c2_i32_158, %c0_i32_159] : memref<32x256xf32, #tpu.memory_space<vmem>> -> memref<1x256xf32, #tpu.memory_space<vmem>>
    %172 = tpu.memref_slice %arg7[%c2_i32_156] : memref<32x!tpu.dma_semaphore, #tpu.memory_space<semaphore_mem>> -> memref<1x!tpu.dma_semaphore, #tpu.memory_space<semaphore_mem>>
    %173 = tpu.memref_squeeze %172 : memref<1x!tpu.dma_semaphore, #tpu.memory_space<semaphore_mem>> -> memref<!tpu.dma_semaphore, #tpu.memory_space<semaphore_mem>>
    tpu.wait_dma2 semaphore(%173 : memref<!tpu.dma_semaphore, #tpu.memory_space<semaphore_mem>>) src(%170 : memref<1x256xf32, #tpu.memory_space<any>>) dst(%171 : memref<1x256xf32, #tpu.memory_space<vmem>>)
    %c3_i32_160 = arith.constant 3 : i32
    %c0_i32_161 = arith.constant 0 : i32
    %174 = tpu.memref_slice %arg2[%15, %c0_i32_161] : memref<3200x256xf32, #tpu.memory_space<any>> -> memref<1x256xf32, #tpu.memory_space<any>>
    %c3_i32_162 = arith.constant 3 : i32
    %c0_i32_163 = arith.constant 0 : i32
    %175 = tpu.memref_slice %arg6[%c3_i32_162, %c0_i32_163] : memref<32x256xf32, #tpu.memory_space<vmem>> -> memref<1x256xf32, #tpu.memory_space<vmem>>
    %176 = tpu.memref_slice %arg7[%c3_i32_160] : memref<32x!tpu.dma_semaphore, #tpu.memory_space<semaphore_mem>> -> memref<1x!tpu.dma_semaphore, #tpu.memory_space<semaphore_mem>>
    %177 = tpu.memref_squeeze %176 : memref<1x!tpu.dma_semaphore, #tpu.memory_space<semaphore_mem>> -> memref<!tpu.dma_semaphore, #tpu.memory_space<semaphore_mem>>
    tpu.wait_dma2 semaphore(%177 : memref<!tpu.dma_semaphore, #tpu.memory_space<semaphore_mem>>) src(%174 : memref<1x256xf32, #tpu.memory_space<any>>) dst(%175 : memref<1x256xf32, #tpu.memory_space<vmem>>)
    %c4_i32_164 = arith.constant 4 : i32
    %c0_i32_165 = arith.constant 0 : i32
    %178 = tpu.memref_slice %arg2[%20, %c0_i32_165] : memref<3200x256xf32, #tpu.memory_space<any>> -> memref<1x256xf32, #tpu.memory_space<any>>
    %c4_i32_166 = arith.constant 4 : i32
    %c0_i32_167 = arith.constant 0 : i32
    %179 = tpu.memref_slice %arg6[%c4_i32_166, %c0_i32_167] : memref<32x256xf32, #tpu.memory_space<vmem>> -> memref<1x256xf32, #tpu.memory_space<vmem>>
    %180 = tpu.memref_slice %arg7[%c4_i32_164] : memref<32x!tpu.dma_semaphore, #tpu.memory_space<semaphore_mem>> -> memref<1x!tpu.dma_semaphore, #tpu.memory_space<semaphore_mem>>
    %181 = tpu.memref_squeeze %180 : memref<1x!tpu.dma_semaphore, #tpu.memory_space<semaphore_mem>> -> memref<!tpu.dma_semaphore, #tpu.memory_space<semaphore_mem>>
    tpu.wait_dma2 semaphore(%181 : memref<!tpu.dma_semaphore, #tpu.memory_space<semaphore_mem>>) src(%178 : memref<1x256xf32, #tpu.memory_space<any>>) dst(%179 : memref<1x256xf32, #tpu.memory_space<vmem>>)
    %c5_i32_168 = arith.constant 5 : i32
    %c0_i32_169 = arith.constant 0 : i32
    %182 = tpu.memref_slice %arg2[%25, %c0_i32_169] : memref<3200x256xf32, #tpu.memory_space<any>> -> memref<1x256xf32, #tpu.memory_space<any>>
    %c5_i32_170 = arith.constant 5 : i32
    %c0_i32_171 = arith.constant 0 : i32
    %183 = tpu.memref_slice %arg6[%c5_i32_170, %c0_i32_171] : memref<32x256xf32, #tpu.memory_space<vmem>> -> memref<1x256xf32, #tpu.memory_space<vmem>>
    %184 = tpu.memref_slice %arg7[%c5_i32_168] : memref<32x!tpu.dma_semaphore, #tpu.memory_space<semaphore_mem>> -> memref<1x!tpu.dma_semaphore, #tpu.memory_space<semaphore_mem>>
    %185 = tpu.memref_squeeze %184 : memref<1x!tpu.dma_semaphore, #tpu.memory_space<semaphore_mem>> -> memref<!tpu.dma_semaphore, #tpu.memory_space<semaphore_mem>>
    tpu.wait_dma2 semaphore(%185 : memref<!tpu.dma_semaphore, #tpu.memory_space<semaphore_mem>>) src(%182 : memref<1x256xf32, #tpu.memory_space<any>>) dst(%183 : memref<1x256xf32, #tpu.memory_space<vmem>>)
    %c6_i32_172 = arith.constant 6 : i32
    %c0_i32_173 = arith.constant 0 : i32
    %186 = tpu.memref_slice %arg2[%30, %c0_i32_173] : memref<3200x256xf32, #tpu.memory_space<any>> -> memref<1x256xf32, #tpu.memory_space<any>>
    %c6_i32_174 = arith.constant 6 : i32
    %c0_i32_175 = arith.constant 0 : i32
    %187 = tpu.memref_slice %arg6[%c6_i32_174, %c0_i32_175] : memref<32x256xf32, #tpu.memory_space<vmem>> -> memref<1x256xf32, #tpu.memory_space<vmem>>
    %188 = tpu.memref_slice %arg7[%c6_i32_172] : memref<32x!tpu.dma_semaphore, #tpu.memory_space<semaphore_mem>> -> memref<1x!tpu.dma_semaphore, #tpu.memory_space<semaphore_mem>>
    %189 = tpu.memref_squeeze %188 : memref<1x!tpu.dma_semaphore, #tpu.memory_space<semaphore_mem>> -> memref<!tpu.dma_semaphore, #tpu.memory_space<semaphore_mem>>
    tpu.wait_dma2 semaphore(%189 : memref<!tpu.dma_semaphore, #tpu.memory_space<semaphore_mem>>) src(%186 : memref<1x256xf32, #tpu.memory_space<any>>) dst(%187 : memref<1x256xf32, #tpu.memory_space<vmem>>)
    %c7_i32_176 = arith.constant 7 : i32
    %c0_i32_177 = arith.constant 0 : i32
    %190 = tpu.memref_slice %arg2[%35, %c0_i32_177] : memref<3200x256xf32, #tpu.memory_space<any>> -> memref<1x256xf32, #tpu.memory_space<any>>
    %c7_i32_178 = arith.constant 7 : i32
    %c0_i32_179 = arith.constant 0 : i32
    %191 = tpu.memref_slice %arg6[%c7_i32_178, %c0_i32_179] : memref<32x256xf32, #tpu.memory_space<vmem>> -> memref<1x256xf32, #tpu.memory_space<vmem>>
    %192 = tpu.memref_slice %arg7[%c7_i32_176] : memref<32x!tpu.dma_semaphore, #tpu.memory_space<semaphore_mem>> -> memref<1x!tpu.dma_semaphore, #tpu.memory_space<semaphore_mem>>
    %193 = tpu.memref_squeeze %192 : memref<1x!tpu.dma_semaphore, #tpu.memory_space<semaphore_mem>> -> memref<!tpu.dma_semaphore, #tpu.memory_space<semaphore_mem>>
    tpu.wait_dma2 semaphore(%193 : memref<!tpu.dma_semaphore, #tpu.memory_space<semaphore_mem>>) src(%190 : memref<1x256xf32, #tpu.memory_space<any>>) dst(%191 : memref<1x256xf32, #tpu.memory_space<vmem>>)
    %c8_i32_180 = arith.constant 8 : i32
    %c0_i32_181 = arith.constant 0 : i32
    %194 = tpu.memref_slice %arg2[%40, %c0_i32_181] : memref<3200x256xf32, #tpu.memory_space<any>> -> memref<1x256xf32, #tpu.memory_space<any>>
    %c8_i32_182 = arith.constant 8 : i32
    %c0_i32_183 = arith.constant 0 : i32
    %195 = tpu.memref_slice %arg6[%c8_i32_182, %c0_i32_183] : memref<32x256xf32, #tpu.memory_space<vmem>> -> memref<1x256xf32, #tpu.memory_space<vmem>>
    %196 = tpu.memref_slice %arg7[%c8_i32_180] : memref<32x!tpu.dma_semaphore, #tpu.memory_space<semaphore_mem>> -> memref<1x!tpu.dma_semaphore, #tpu.memory_space<semaphore_mem>>
    %197 = tpu.memref_squeeze %196 : memref<1x!tpu.dma_semaphore, #tpu.memory_space<semaphore_mem>> -> memref<!tpu.dma_semaphore, #tpu.memory_space<semaphore_mem>>
    tpu.wait_dma2 semaphore(%197 : memref<!tpu.dma_semaphore, #tpu.memory_space<semaphore_mem>>) src(%194 : memref<1x256xf32, #tpu.memory_space<any>>) dst(%195 : memref<1x256xf32, #tpu.memory_space<vmem>>)
    %c9_i32_184 = arith.constant 9 : i32
    %c0_i32_185 = arith.constant 0 : i32
    %198 = tpu.memref_slice %arg2[%45, %c0_i32_185] : memref<3200x256xf32, #tpu.memory_space<any>> -> memref<1x256xf32, #tpu.memory_space<any>>
    %c9_i32_186 = arith.constant 9 : i32
    %c0_i32_187 = arith.constant 0 : i32
    %199 = tpu.memref_slice %arg6[%c9_i32_186, %c0_i32_187] : memref<32x256xf32, #tpu.memory_space<vmem>> -> memref<1x256xf32, #tpu.memory_space<vmem>>
    %200 = tpu.memref_slice %arg7[%c9_i32_184] : memref<32x!tpu.dma_semaphore, #tpu.memory_space<semaphore_mem>> -> memref<1x!tpu.dma_semaphore, #tpu.memory_space<semaphore_mem>>
    %201 = tpu.memref_squeeze %200 : memref<1x!tpu.dma_semaphore, #tpu.memory_space<semaphore_mem>> -> memref<!tpu.dma_semaphore, #tpu.memory_space<semaphore_mem>>
    tpu.wait_dma2 semaphore(%201 : memref<!tpu.dma_semaphore, #tpu.memory_space<semaphore_mem>>) src(%198 : memref<1x256xf32, #tpu.memory_space<any>>) dst(%199 : memref<1x256xf32, #tpu.memory_space<vmem>>)
    %c10_i32_188 = arith.constant 10 : i32
    %c0_i32_189 = arith.constant 0 : i32
    %202 = tpu.memref_slice %arg2[%50, %c0_i32_189] : memref<3200x256xf32, #tpu.memory_space<any>> -> memref<1x256xf32, #tpu.memory_space<any>>
    %c10_i32_190 = arith.constant 10 : i32
    %c0_i32_191 = arith.constant 0 : i32
    %203 = tpu.memref_slice %arg6[%c10_i32_190, %c0_i32_191] : memref<32x256xf32, #tpu.memory_space<vmem>> -> memref<1x256xf32, #tpu.memory_space<vmem>>
    %204 = tpu.memref_slice %arg7[%c10_i32_188] : memref<32x!tpu.dma_semaphore, #tpu.memory_space<semaphore_mem>> -> memref<1x!tpu.dma_semaphore, #tpu.memory_space<semaphore_mem>>
    %205 = tpu.memref_squeeze %204 : memref<1x!tpu.dma_semaphore, #tpu.memory_space<semaphore_mem>> -> memref<!tpu.dma_semaphore, #tpu.memory_space<semaphore_mem>>
    tpu.wait_dma2 semaphore(%205 : memref<!tpu.dma_semaphore, #tpu.memory_space<semaphore_mem>>) src(%202 : memref<1x256xf32, #tpu.memory_space<any>>) dst(%203 : memref<1x256xf32, #tpu.memory_space<vmem>>)
    %c11_i32_192 = arith.constant 11 : i32
    %c0_i32_193 = arith.constant 0 : i32
    %206 = tpu.memref_slice %arg2[%55, %c0_i32_193] : memref<3200x256xf32, #tpu.memory_space<any>> -> memref<1x256xf32, #tpu.memory_space<any>>
    %c11_i32_194 = arith.constant 11 : i32
    %c0_i32_195 = arith.constant 0 : i32
    %207 = tpu.memref_slice %arg6[%c11_i32_194, %c0_i32_195] : memref<32x256xf32, #tpu.memory_space<vmem>> -> memref<1x256xf32, #tpu.memory_space<vmem>>
    %208 = tpu.memref_slice %arg7[%c11_i32_192] : memref<32x!tpu.dma_semaphore, #tpu.memory_space<semaphore_mem>> -> memref<1x!tpu.dma_semaphore, #tpu.memory_space<semaphore_mem>>
    %209 = tpu.memref_squeeze %208 : memref<1x!tpu.dma_semaphore, #tpu.memory_space<semaphore_mem>> -> memref<!tpu.dma_semaphore, #tpu.memory_space<semaphore_mem>>
    tpu.wait_dma2 semaphore(%209 : memref<!tpu.dma_semaphore, #tpu.memory_space<semaphore_mem>>) src(%206 : memref<1x256xf32, #tpu.memory_space<any>>) dst(%207 : memref<1x256xf32, #tpu.memory_space<vmem>>)
    %c12_i32_196 = arith.constant 12 : i32
    %c0_i32_197 = arith.constant 0 : i32
    %210 = tpu.memref_slice %arg2[%60, %c0_i32_197] : memref<3200x256xf32, #tpu.memory_space<any>> -> memref<1x256xf32, #tpu.memory_space<any>>
    %c12_i32_198 = arith.constant 12 : i32
    %c0_i32_199 = arith.constant 0 : i32
    %211 = tpu.memref_slice %arg6[%c12_i32_198, %c0_i32_199] : memref<32x256xf32, #tpu.memory_space<vmem>> -> memref<1x256xf32, #tpu.memory_space<vmem>>
    %212 = tpu.memref_slice %arg7[%c12_i32_196] : memref<32x!tpu.dma_semaphore, #tpu.memory_space<semaphore_mem>> -> memref<1x!tpu.dma_semaphore, #tpu.memory_space<semaphore_mem>>
    %213 = tpu.memref_squeeze %212 : memref<1x!tpu.dma_semaphore, #tpu.memory_space<semaphore_mem>> -> memref<!tpu.dma_semaphore, #tpu.memory_space<semaphore_mem>>
    tpu.wait_dma2 semaphore(%213 : memref<!tpu.dma_semaphore, #tpu.memory_space<semaphore_mem>>) src(%210 : memref<1x256xf32, #tpu.memory_space<any>>) dst(%211 : memref<1x256xf32, #tpu.memory_space<vmem>>)
    %c13_i32_200 = arith.constant 13 : i32
    %c0_i32_201 = arith.constant 0 : i32
    %214 = tpu.memref_slice %arg2[%65, %c0_i32_201] : memref<3200x256xf32, #tpu.memory_space<any>> -> memref<1x256xf32, #tpu.memory_space<any>>
    %c13_i32_202 = arith.constant 13 : i32
    %c0_i32_203 = arith.constant 0 : i32
    %215 = tpu.memref_slice %arg6[%c13_i32_202, %c0_i32_203] : memref<32x256xf32, #tpu.memory_space<vmem>> -> memref<1x256xf32, #tpu.memory_space<vmem>>
    %216 = tpu.memref_slice %arg7[%c13_i32_200] : memref<32x!tpu.dma_semaphore, #tpu.memory_space<semaphore_mem>> -> memref<1x!tpu.dma_semaphore, #tpu.memory_space<semaphore_mem>>
    %217 = tpu.memref_squeeze %216 : memref<1x!tpu.dma_semaphore, #tpu.memory_space<semaphore_mem>> -> memref<!tpu.dma_semaphore, #tpu.memory_space<semaphore_mem>>
    tpu.wait_dma2 semaphore(%217 : memref<!tpu.dma_semaphore, #tpu.memory_space<semaphore_mem>>) src(%214 : memref<1x256xf32, #tpu.memory_space<any>>) dst(%215 : memref<1x256xf32, #tpu.memory_space<vmem>>)
    %c14_i32_204 = arith.constant 14 : i32
    %c0_i32_205 = arith.constant 0 : i32
    %218 = tpu.memref_slice %arg2[%70, %c0_i32_205] : memref<3200x256xf32, #tpu.memory_space<any>> -> memref<1x256xf32, #tpu.memory_space<any>>
    %c14_i32_206 = arith.constant 14 : i32
    %c0_i32_207 = arith.constant 0 : i32
    %219 = tpu.memref_slice %arg6[%c14_i32_206, %c0_i32_207] : memref<32x256xf32, #tpu.memory_space<vmem>> -> memref<1x256xf32, #tpu.memory_space<vmem>>
    %220 = tpu.memref_slice %arg7[%c14_i32_204] : memref<32x!tpu.dma_semaphore, #tpu.memory_space<semaphore_mem>> -> memref<1x!tpu.dma_semaphore, #tpu.memory_space<semaphore_mem>>
    %221 = tpu.memref_squeeze %220 : memref<1x!tpu.dma_semaphore, #tpu.memory_space<semaphore_mem>> -> memref<!tpu.dma_semaphore, #tpu.memory_space<semaphore_mem>>
    tpu.wait_dma2 semaphore(%221 : memref<!tpu.dma_semaphore, #tpu.memory_space<semaphore_mem>>) src(%218 : memref<1x256xf32, #tpu.memory_space<any>>) dst(%219 : memref<1x256xf32, #tpu.memory_space<vmem>>)
    %c15_i32_208 = arith.constant 15 : i32
    %c0_i32_209 = arith.constant 0 : i32
    %222 = tpu.memref_slice %arg2[%75, %c0_i32_209] : memref<3200x256xf32, #tpu.memory_space<any>> -> memref<1x256xf32, #tpu.memory_space<any>>
    %c15_i32_210 = arith.constant 15 : i32
    %c0_i32_211 = arith.constant 0 : i32
    %223 = tpu.memref_slice %arg6[%c15_i32_210, %c0_i32_211] : memref<32x256xf32, #tpu.memory_space<vmem>> -> memref<1x256xf32, #tpu.memory_space<vmem>>
    %224 = tpu.memref_slice %arg7[%c15_i32_208] : memref<32x!tpu.dma_semaphore, #tpu.memory_space<semaphore_mem>> -> memref<1x!tpu.dma_semaphore, #tpu.memory_space<semaphore_mem>>
    %225 = tpu.memref_squeeze %224 : memref<1x!tpu.dma_semaphore, #tpu.memory_space<semaphore_mem>> -> memref<!tpu.dma_semaphore, #tpu.memory_space<semaphore_mem>>
    tpu.wait_dma2 semaphore(%225 : memref<!tpu.dma_semaphore, #tpu.memory_space<semaphore_mem>>) src(%222 : memref<1x256xf32, #tpu.memory_space<any>>) dst(%223 : memref<1x256xf32, #tpu.memory_space<vmem>>)
    %c0_212 = arith.constant 0 : index
    %c0_213 = arith.constant 0 : index
    %226 = vector.load %arg6[%c0_212, %c0_213] : memref<32x256xf32, #tpu.memory_space<vmem>>, vector<16x256xf32>
    %c6_i32_214 = arith.constant 6 : i32
    %227 = tpu.dynamic_rotate %226 by %c6_i32_214 dim 1 : vector<16x256xf32>, i32 -> vector<16x256xf32>
    %c15_i32_215 = arith.constant 15 : i32
    %228 = tpu.dynamic_rotate %227 by %c15_i32_215 dim 0 : vector<16x256xf32>, i32 -> vector<16x256xf32>
    %c5_i32_216 = arith.constant 5 : i32
    %229 = tpu.dynamic_rotate %226 by %c5_i32_216 dim 1 : vector<16x256xf32>, i32 -> vector<16x256xf32>
    %c14_i32_217 = arith.constant 14 : i32
    %230 = tpu.dynamic_rotate %229 by %c14_i32_217 dim 0 : vector<16x256xf32>, i32 -> vector<16x256xf32>
    %231 = arith.mulf %228, %230 : vector<16x256xf32>
    %c4_i32_218 = arith.constant 4 : i32
    %232 = tpu.dynamic_rotate %226 by %c4_i32_218 dim 1 : vector<16x256xf32>, i32 -> vector<16x256xf32>
    %c13_i32_219 = arith.constant 13 : i32
    %233 = tpu.dynamic_rotate %232 by %c13_i32_219 dim 0 : vector<16x256xf32>, i32 -> vector<16x256xf32>
    %234 = arith.mulf %231, %233 : vector<16x256xf32>
    %c3_i32_220 = arith.constant 3 : i32
    %235 = tpu.dynamic_rotate %226 by %c3_i32_220 dim 1 : vector<16x256xf32>, i32 -> vector<16x256xf32>
    %c12_i32_221 = arith.constant 12 : i32
    %236 = tpu.dynamic_rotate %235 by %c12_i32_221 dim 0 : vector<16x256xf32>, i32 -> vector<16x256xf32>
    %237 = arith.mulf %234, %236 : vector<16x256xf32>
    %c2_i32_222 = arith.constant 2 : i32
    %238 = tpu.dynamic_rotate %226 by %c2_i32_222 dim 1 : vector<16x256xf32>, i32 -> vector<16x256xf32>
    %c11_i32_223 = arith.constant 11 : i32
    %239 = tpu.dynamic_rotate %238 by %c11_i32_223 dim 0 : vector<16x256xf32>, i32 -> vector<16x256xf32>
    %240 = arith.mulf %237, %239 : vector<16x256xf32>
    %c1_i32_224 = arith.constant 1 : i32
    %241 = tpu.dynamic_rotate %226 by %c1_i32_224 dim 1 : vector<16x256xf32>, i32 -> vector<16x256xf32>
    %c10_i32_225 = arith.constant 10 : i32
    %242 = tpu.dynamic_rotate %241 by %c10_i32_225 dim 0 : vector<16x256xf32>, i32 -> vector<16x256xf32>
    %243 = arith.mulf %240, %242 : vector<16x256xf32>
    %c9_i32_226 = arith.constant 9 : i32
    %244 = tpu.dynamic_rotate %226 by %c9_i32_226 dim 0 : vector<16x256xf32>, i32 -> vector<16x256xf32>
    %245 = arith.mulf %243, %244 : vector<16x256xf32>
    %246 = arith.mulf %160, %245 : vector<16x256xf32>
    %cst = arith.constant dense<0.000000e+00> : vector<256xf32>
    %247 = vector.multi_reduction <add>, %246, %cst [0] : vector<16x256xf32> to vector<256xf32>
    %248 = vector.shape_cast %247 : vector<256xf32> to vector<1x256xf32>
    %249 = arith.mulf %248, %161 : vector<1x256xf32>
    %cst_227 = arith.constant dense<0.000000e+00> : vector<1xf32>
    %250 = vector.multi_reduction <add>, %249, %cst_227 [1] : vector<1x256xf32> to vector<1xf32>
    %251 = vector.shape_cast %250 : vector<1xf32> to vector<1x1xf32>
    %cst_228 = arith.constant 0.000000e+00 : f32
    %252 = vector.broadcast %cst_228 : f32 to vector<1x1xf32>
    %253 = arith.subf %252, %251 : vector<1x1xf32>
    %254 = math.exp %253 : vector<1x1xf32>
    %cst_229 = arith.constant 1.000000e+00 : f32
    %255 = vector.broadcast %cst_229 : f32 to vector<1x1xf32>
    %256 = arith.addf %255, %254 : vector<1x1xf32>
    %cst_230 = arith.constant 1.000000e+00 : f32
    %257 = vector.broadcast %cst_230 : f32 to vector<1x1xf32>
    %258 = arith.divf %257, %256 : vector<1x1xf32>
    %c0_231 = arith.constant 0 : index
    %c0_232 = arith.constant 0 : index
    %259 = vector.load %arg5[%c0_231, %c0_232] : memref<2x1xf32, #tpu.memory_space<vmem>>, vector<1x1xf32>
    tpu.vector_store %arg5[%c0_231, %c0_232], %258 {strides = array<i32>} : memref<2x1xf32, #tpu.memory_space<vmem>>, vector<1x1xf32>,
    %c16_i32_233 = arith.constant 16 : i32
    %c0_i32_234 = arith.constant 0 : i32
    %260 = tpu.memref_slice %arg2[%80, %c0_i32_234] : memref<3200x256xf32, #tpu.memory_space<any>> -> memref<1x256xf32, #tpu.memory_space<any>>
    %c16_i32_235 = arith.constant 16 : i32
    %c0_i32_236 = arith.constant 0 : i32
    %261 = tpu.memref_slice %arg6[%c16_i32_235, %c0_i32_236] : memref<32x256xf32, #tpu.memory_space<vmem>> -> memref<1x256xf32, #tpu.memory_space<vmem>>
    %262 = tpu.memref_slice %arg7[%c16_i32_233] : memref<32x!tpu.dma_semaphore, #tpu.memory_space<semaphore_mem>> -> memref<1x!tpu.dma_semaphore, #tpu.memory_space<semaphore_mem>>
    %263 = tpu.memref_squeeze %262 : memref<1x!tpu.dma_semaphore, #tpu.memory_space<semaphore_mem>> -> memref<!tpu.dma_semaphore, #tpu.memory_space<semaphore_mem>>
    tpu.wait_dma2 semaphore(%263 : memref<!tpu.dma_semaphore, #tpu.memory_space<semaphore_mem>>) src(%260 : memref<1x256xf32, #tpu.memory_space<any>>) dst(%261 : memref<1x256xf32, #tpu.memory_space<vmem>>)
    %c17_i32_237 = arith.constant 17 : i32
    %c0_i32_238 = arith.constant 0 : i32
    %264 = tpu.memref_slice %arg2[%85, %c0_i32_238] : memref<3200x256xf32, #tpu.memory_space<any>> -> memref<1x256xf32, #tpu.memory_space<any>>
    %c17_i32_239 = arith.constant 17 : i32
    %c0_i32_240 = arith.constant 0 : i32
    %265 = tpu.memref_slice %arg6[%c17_i32_239, %c0_i32_240] : memref<32x256xf32, #tpu.memory_space<vmem>> -> memref<1x256xf32, #tpu.memory_space<vmem>>
    %266 = tpu.memref_slice %arg7[%c17_i32_237] : memref<32x!tpu.dma_semaphore, #tpu.memory_space<semaphore_mem>> -> memref<1x!tpu.dma_semaphore, #tpu.memory_space<semaphore_mem>>
    %267 = tpu.memref_squeeze %266 : memref<1x!tpu.dma_semaphore, #tpu.memory_space<semaphore_mem>> -> memref<!tpu.dma_semaphore, #tpu.memory_space<semaphore_mem>>
    tpu.wait_dma2 semaphore(%267 : memref<!tpu.dma_semaphore, #tpu.memory_space<semaphore_mem>>) src(%264 : memref<1x256xf32, #tpu.memory_space<any>>) dst(%265 : memref<1x256xf32, #tpu.memory_space<vmem>>)
    %c18_i32_241 = arith.constant 18 : i32
    %c0_i32_242 = arith.constant 0 : i32
    %268 = tpu.memref_slice %arg2[%90, %c0_i32_242] : memref<3200x256xf32, #tpu.memory_space<any>> -> memref<1x256xf32, #tpu.memory_space<any>>
    %c18_i32_243 = arith.constant 18 : i32
    %c0_i32_244 = arith.constant 0 : i32
    %269 = tpu.memref_slice %arg6[%c18_i32_243, %c0_i32_244] : memref<32x256xf32, #tpu.memory_space<vmem>> -> memref<1x256xf32, #tpu.memory_space<vmem>>
    %270 = tpu.memref_slice %arg7[%c18_i32_241] : memref<32x!tpu.dma_semaphore, #tpu.memory_space<semaphore_mem>> -> memref<1x!tpu.dma_semaphore, #tpu.memory_space<semaphore_mem>>
    %271 = tpu.memref_squeeze %270 : memref<1x!tpu.dma_semaphore, #tpu.memory_space<semaphore_mem>> -> memref<!tpu.dma_semaphore, #tpu.memory_space<semaphore_mem>>
    tpu.wait_dma2 semaphore(%271 : memref<!tpu.dma_semaphore, #tpu.memory_space<semaphore_mem>>) src(%268 : memref<1x256xf32, #tpu.memory_space<any>>) dst(%269 : memref<1x256xf32, #tpu.memory_space<vmem>>)
    %c19_i32_245 = arith.constant 19 : i32
    %c0_i32_246 = arith.constant 0 : i32
    %272 = tpu.memref_slice %arg2[%95, %c0_i32_246] : memref<3200x256xf32, #tpu.memory_space<any>> -> memref<1x256xf32, #tpu.memory_space<any>>
    %c19_i32_247 = arith.constant 19 : i32
    %c0_i32_248 = arith.constant 0 : i32
    %273 = tpu.memref_slice %arg6[%c19_i32_247, %c0_i32_248] : memref<32x256xf32, #tpu.memory_space<vmem>> -> memref<1x256xf32, #tpu.memory_space<vmem>>
    %274 = tpu.memref_slice %arg7[%c19_i32_245] : memref<32x!tpu.dma_semaphore, #tpu.memory_space<semaphore_mem>> -> memref<1x!tpu.dma_semaphore, #tpu.memory_space<semaphore_mem>>
    %275 = tpu.memref_squeeze %274 : memref<1x!tpu.dma_semaphore, #tpu.memory_space<semaphore_mem>> -> memref<!tpu.dma_semaphore, #tpu.memory_space<semaphore_mem>>
    tpu.wait_dma2 semaphore(%275 : memref<!tpu.dma_semaphore, #tpu.memory_space<semaphore_mem>>) src(%272 : memref<1x256xf32, #tpu.memory_space<any>>) dst(%273 : memref<1x256xf32, #tpu.memory_space<vmem>>)
    %c20_i32_249 = arith.constant 20 : i32
    %c0_i32_250 = arith.constant 0 : i32
    %276 = tpu.memref_slice %arg2[%100, %c0_i32_250] : memref<3200x256xf32, #tpu.memory_space<any>> -> memref<1x256xf32, #tpu.memory_space<any>>
    %c20_i32_251 = arith.constant 20 : i32
    %c0_i32_252 = arith.constant 0 : i32
    %277 = tpu.memref_slice %arg6[%c20_i32_251, %c0_i32_252] : memref<32x256xf32, #tpu.memory_space<vmem>> -> memref<1x256xf32, #tpu.memory_space<vmem>>
    %278 = tpu.memref_slice %arg7[%c20_i32_249] : memref<32x!tpu.dma_semaphore, #tpu.memory_space<semaphore_mem>> -> memref<1x!tpu.dma_semaphore, #tpu.memory_space<semaphore_mem>>
    %279 = tpu.memref_squeeze %278 : memref<1x!tpu.dma_semaphore, #tpu.memory_space<semaphore_mem>> -> memref<!tpu.dma_semaphore, #tpu.memory_space<semaphore_mem>>
    tpu.wait_dma2 semaphore(%279 : memref<!tpu.dma_semaphore, #tpu.memory_space<semaphore_mem>>) src(%276 : memref<1x256xf32, #tpu.memory_space<any>>) dst(%277 : memref<1x256xf32, #tpu.memory_space<vmem>>)
    %c21_i32_253 = arith.constant 21 : i32
    %c0_i32_254 = arith.constant 0 : i32
    %280 = tpu.memref_slice %arg2[%105, %c0_i32_254] : memref<3200x256xf32, #tpu.memory_space<any>> -> memref<1x256xf32, #tpu.memory_space<any>>
    %c21_i32_255 = arith.constant 21 : i32
    %c0_i32_256 = arith.constant 0 : i32
    %281 = tpu.memref_slice %arg6[%c21_i32_255, %c0_i32_256] : memref<32x256xf32, #tpu.memory_space<vmem>> -> memref<1x256xf32, #tpu.memory_space<vmem>>
    %282 = tpu.memref_slice %arg7[%c21_i32_253] : memref<32x!tpu.dma_semaphore, #tpu.memory_space<semaphore_mem>> -> memref<1x!tpu.dma_semaphore, #tpu.memory_space<semaphore_mem>>
    %283 = tpu.memref_squeeze %282 : memref<1x!tpu.dma_semaphore, #tpu.memory_space<semaphore_mem>> -> memref<!tpu.dma_semaphore, #tpu.memory_space<semaphore_mem>>
    tpu.wait_dma2 semaphore(%283 : memref<!tpu.dma_semaphore, #tpu.memory_space<semaphore_mem>>) src(%280 : memref<1x256xf32, #tpu.memory_space<any>>) dst(%281 : memref<1x256xf32, #tpu.memory_space<vmem>>)
    %c22_i32_257 = arith.constant 22 : i32
    %c0_i32_258 = arith.constant 0 : i32
    %284 = tpu.memref_slice %arg2[%110, %c0_i32_258] : memref<3200x256xf32, #tpu.memory_space<any>> -> memref<1x256xf32, #tpu.memory_space<any>>
    %c22_i32_259 = arith.constant 22 : i32
    %c0_i32_260 = arith.constant 0 : i32
    %285 = tpu.memref_slice %arg6[%c22_i32_259, %c0_i32_260] : memref<32x256xf32, #tpu.memory_space<vmem>> -> memref<1x256xf32, #tpu.memory_space<vmem>>
    %286 = tpu.memref_slice %arg7[%c22_i32_257] : memref<32x!tpu.dma_semaphore, #tpu.memory_space<semaphore_mem>> -> memref<1x!tpu.dma_semaphore, #tpu.memory_space<semaphore_mem>>
    %287 = tpu.memref_squeeze %286 : memref<1x!tpu.dma_semaphore, #tpu.memory_space<semaphore_mem>> -> memref<!tpu.dma_semaphore, #tpu.memory_space<semaphore_mem>>
    tpu.wait_dma2 semaphore(%287 : memref<!tpu.dma_semaphore, #tpu.memory_space<semaphore_mem>>) src(%284 : memref<1x256xf32, #tpu.memory_space<any>>) dst(%285 : memref<1x256xf32, #tpu.memory_space<vmem>>)
    %c23_i32_261 = arith.constant 23 : i32
    %c0_i32_262 = arith.constant 0 : i32
    %288 = tpu.memref_slice %arg2[%115, %c0_i32_262] : memref<3200x256xf32, #tpu.memory_space<any>> -> memref<1x256xf32, #tpu.memory_space<any>>
    %c23_i32_263 = arith.constant 23 : i32
    %c0_i32_264 = arith.constant 0 : i32
    %289 = tpu.memref_slice %arg6[%c23_i32_263, %c0_i32_264] : memref<32x256xf32, #tpu.memory_space<vmem>> -> memref<1x256xf32, #tpu.memory_space<vmem>>
    %290 = tpu.memref_slice %arg7[%c23_i32_261] : memref<32x!tpu.dma_semaphore, #tpu.memory_space<semaphore_mem>> -> memref<1x!tpu.dma_semaphore, #tpu.memory_space<semaphore_mem>>
    %291 = tpu.memref_squeeze %290 : memref<1x!tpu.dma_semaphore, #tpu.memory_space<semaphore_mem>> -> memref<!tpu.dma_semaphore, #tpu.memory_space<semaphore_mem>>
    tpu.wait_dma2 semaphore(%291 : memref<!tpu.dma_semaphore, #tpu.memory_space<semaphore_mem>>) src(%288 : memref<1x256xf32, #tpu.memory_space<any>>) dst(%289 : memref<1x256xf32, #tpu.memory_space<vmem>>)
    %c24_i32_265 = arith.constant 24 : i32
    %c0_i32_266 = arith.constant 0 : i32
    %292 = tpu.memref_slice %arg2[%120, %c0_i32_266] : memref<3200x256xf32, #tpu.memory_space<any>> -> memref<1x256xf32, #tpu.memory_space<any>>
    %c24_i32_267 = arith.constant 24 : i32
    %c0_i32_268 = arith.constant 0 : i32
    %293 = tpu.memref_slice %arg6[%c24_i32_267, %c0_i32_268] : memref<32x256xf32, #tpu.memory_space<vmem>> -> memref<1x256xf32, #tpu.memory_space<vmem>>
    %294 = tpu.memref_slice %arg7[%c24_i32_265] : memref<32x!tpu.dma_semaphore, #tpu.memory_space<semaphore_mem>> -> memref<1x!tpu.dma_semaphore, #tpu.memory_space<semaphore_mem>>
    %295 = tpu.memref_squeeze %294 : memref<1x!tpu.dma_semaphore, #tpu.memory_space<semaphore_mem>> -> memref<!tpu.dma_semaphore, #tpu.memory_space<semaphore_mem>>
    tpu.wait_dma2 semaphore(%295 : memref<!tpu.dma_semaphore, #tpu.memory_space<semaphore_mem>>) src(%292 : memref<1x256xf32, #tpu.memory_space<any>>) dst(%293 : memref<1x256xf32, #tpu.memory_space<vmem>>)
    %c25_i32_269 = arith.constant 25 : i32
    %c0_i32_270 = arith.constant 0 : i32
    %296 = tpu.memref_slice %arg2[%125, %c0_i32_270] : memref<3200x256xf32, #tpu.memory_space<any>> -> memref<1x256xf32, #tpu.memory_space<any>>
    %c25_i32_271 = arith.constant 25 : i32
    %c0_i32_272 = arith.constant 0 : i32
    %297 = tpu.memref_slice %arg6[%c25_i32_271, %c0_i32_272] : memref<32x256xf32, #tpu.memory_space<vmem>> -> memref<1x256xf32, #tpu.memory_space<vmem>>
    %298 = tpu.memref_slice %arg7[%c25_i32_269] : memref<32x!tpu.dma_semaphore, #tpu.memory_space<semaphore_mem>> -> memref<1x!tpu.dma_semaphore, #tpu.memory_space<semaphore_mem>>
    %299 = tpu.memref_squeeze %298 : memref<1x!tpu.dma_semaphore, #tpu.memory_space<semaphore_mem>> -> memref<!tpu.dma_semaphore, #tpu.memory_space<semaphore_mem>>
    tpu.wait_dma2 semaphore(%299 : memref<!tpu.dma_semaphore, #tpu.memory_space<semaphore_mem>>) src(%296 : memref<1x256xf32, #tpu.memory_space<any>>) dst(%297 : memref<1x256xf32, #tpu.memory_space<vmem>>)
    %c26_i32_273 = arith.constant 26 : i32
    %c0_i32_274 = arith.constant 0 : i32
    %300 = tpu.memref_slice %arg2[%130, %c0_i32_274] : memref<3200x256xf32, #tpu.memory_space<any>> -> memref<1x256xf32, #tpu.memory_space<any>>
    %c26_i32_275 = arith.constant 26 : i32
    %c0_i32_276 = arith.constant 0 : i32
    %301 = tpu.memref_slice %arg6[%c26_i32_275, %c0_i32_276] : memref<32x256xf32, #tpu.memory_space<vmem>> -> memref<1x256xf32, #tpu.memory_space<vmem>>
    %302 = tpu.memref_slice %arg7[%c26_i32_273] : memref<32x!tpu.dma_semaphore, #tpu.memory_space<semaphore_mem>> -> memref<1x!tpu.dma_semaphore, #tpu.memory_space<semaphore_mem>>
    %303 = tpu.memref_squeeze %302 : memref<1x!tpu.dma_semaphore, #tpu.memory_space<semaphore_mem>> -> memref<!tpu.dma_semaphore, #tpu.memory_space<semaphore_mem>>
    tpu.wait_dma2 semaphore(%303 : memref<!tpu.dma_semaphore, #tpu.memory_space<semaphore_mem>>) src(%300 : memref<1x256xf32, #tpu.memory_space<any>>) dst(%301 : memref<1x256xf32, #tpu.memory_space<vmem>>)
    %c27_i32_277 = arith.constant 27 : i32
    %c0_i32_278 = arith.constant 0 : i32
    %304 = tpu.memref_slice %arg2[%135, %c0_i32_278] : memref<3200x256xf32, #tpu.memory_space<any>> -> memref<1x256xf32, #tpu.memory_space<any>>
    %c27_i32_279 = arith.constant 27 : i32
    %c0_i32_280 = arith.constant 0 : i32
    %305 = tpu.memref_slice %arg6[%c27_i32_279, %c0_i32_280] : memref<32x256xf32, #tpu.memory_space<vmem>> -> memref<1x256xf32, #tpu.memory_space<vmem>>
    %306 = tpu.memref_slice %arg7[%c27_i32_277] : memref<32x!tpu.dma_semaphore, #tpu.memory_space<semaphore_mem>> -> memref<1x!tpu.dma_semaphore, #tpu.memory_space<semaphore_mem>>
    %307 = tpu.memref_squeeze %306 : memref<1x!tpu.dma_semaphore, #tpu.memory_space<semaphore_mem>> -> memref<!tpu.dma_semaphore, #tpu.memory_space<semaphore_mem>>
    tpu.wait_dma2 semaphore(%307 : memref<!tpu.dma_semaphore, #tpu.memory_space<semaphore_mem>>) src(%304 : memref<1x256xf32, #tpu.memory_space<any>>) dst(%305 : memref<1x256xf32, #tpu.memory_space<vmem>>)
    %c28_i32_281 = arith.constant 28 : i32
    %c0_i32_282 = arith.constant 0 : i32
    %308 = tpu.memref_slice %arg2[%140, %c0_i32_282] : memref<3200x256xf32, #tpu.memory_space<any>> -> memref<1x256xf32, #tpu.memory_space<any>>
    %c28_i32_283 = arith.constant 28 : i32
    %c0_i32_284 = arith.constant 0 : i32
    %309 = tpu.memref_slice %arg6[%c28_i32_283, %c0_i32_284] : memref<32x256xf32, #tpu.memory_space<vmem>> -> memref<1x256xf32, #tpu.memory_space<vmem>>
    %310 = tpu.memref_slice %arg7[%c28_i32_281] : memref<32x!tpu.dma_semaphore, #tpu.memory_space<semaphore_mem>> -> memref<1x!tpu.dma_semaphore, #tpu.memory_space<semaphore_mem>>
    %311 = tpu.memref_squeeze %310 : memref<1x!tpu.dma_semaphore, #tpu.memory_space<semaphore_mem>> -> memref<!tpu.dma_semaphore, #tpu.memory_space<semaphore_mem>>
    tpu.wait_dma2 semaphore(%311 : memref<!tpu.dma_semaphore, #tpu.memory_space<semaphore_mem>>) src(%308 : memref<1x256xf32, #tpu.memory_space<any>>) dst(%309 : memref<1x256xf32, #tpu.memory_space<vmem>>)
    %c29_i32_285 = arith.constant 29 : i32
    %c0_i32_286 = arith.constant 0 : i32
    %312 = tpu.memref_slice %arg2[%145, %c0_i32_286] : memref<3200x256xf32, #tpu.memory_space<any>> -> memref<1x256xf32, #tpu.memory_space<any>>
    %c29_i32_287 = arith.constant 29 : i32
    %c0_i32_288 = arith.constant 0 : i32
    %313 = tpu.memref_slice %arg6[%c29_i32_287, %c0_i32_288] : memref<32x256xf32, #tpu.memory_space<vmem>> -> memref<1x256xf32, #tpu.memory_space<vmem>>
    %314 = tpu.memref_slice %arg7[%c29_i32_285] : memref<32x!tpu.dma_semaphore, #tpu.memory_space<semaphore_mem>> -> memref<1x!tpu.dma_semaphore, #tpu.memory_space<semaphore_mem>>
    %315 = tpu.memref_squeeze %314 : memref<1x!tpu.dma_semaphore, #tpu.memory_space<semaphore_mem>> -> memref<!tpu.dma_semaphore, #tpu.memory_space<semaphore_mem>>
    tpu.wait_dma2 semaphore(%315 : memref<!tpu.dma_semaphore, #tpu.memory_space<semaphore_mem>>) src(%312 : memref<1x256xf32, #tpu.memory_space<any>>) dst(%313 : memref<1x256xf32, #tpu.memory_space<vmem>>)
    %c30_i32_289 = arith.constant 30 : i32
    %c0_i32_290 = arith.constant 0 : i32
    %316 = tpu.memref_slice %arg2[%150, %c0_i32_290] : memref<3200x256xf32, #tpu.memory_space<any>> -> memref<1x256xf32, #tpu.memory_space<any>>
    %c30_i32_291 = arith.constant 30 : i32
    %c0_i32_292 = arith.constant 0 : i32
    %317 = tpu.memref_slice %arg6[%c30_i32_291, %c0_i32_292] : memref<32x256xf32, #tpu.memory_space<vmem>> -> memref<1x256xf32, #tpu.memory_space<vmem>>
    %318 = tpu.memref_slice %arg7[%c30_i32_289] : memref<32x!tpu.dma_semaphore, #tpu.memory_space<semaphore_mem>> -> memref<1x!tpu.dma_semaphore, #tpu.memory_space<semaphore_mem>>
    %319 = tpu.memref_squeeze %318 : memref<1x!tpu.dma_semaphore, #tpu.memory_space<semaphore_mem>> -> memref<!tpu.dma_semaphore, #tpu.memory_space<semaphore_mem>>
    tpu.wait_dma2 semaphore(%319 : memref<!tpu.dma_semaphore, #tpu.memory_space<semaphore_mem>>) src(%316 : memref<1x256xf32, #tpu.memory_space<any>>) dst(%317 : memref<1x256xf32, #tpu.memory_space<vmem>>)
    %c31_i32_293 = arith.constant 31 : i32
    %c0_i32_294 = arith.constant 0 : i32
    %320 = tpu.memref_slice %arg2[%155, %c0_i32_294] : memref<3200x256xf32, #tpu.memory_space<any>> -> memref<1x256xf32, #tpu.memory_space<any>>
    %c31_i32_295 = arith.constant 31 : i32
    %c0_i32_296 = arith.constant 0 : i32
    %321 = tpu.memref_slice %arg6[%c31_i32_295, %c0_i32_296] : memref<32x256xf32, #tpu.memory_space<vmem>> -> memref<1x256xf32, #tpu.memory_space<vmem>>
    %322 = tpu.memref_slice %arg7[%c31_i32_293] : memref<32x!tpu.dma_semaphore, #tpu.memory_space<semaphore_mem>> -> memref<1x!tpu.dma_semaphore, #tpu.memory_space<semaphore_mem>>
    %323 = tpu.memref_squeeze %322 : memref<1x!tpu.dma_semaphore, #tpu.memory_space<semaphore_mem>> -> memref<!tpu.dma_semaphore, #tpu.memory_space<semaphore_mem>>
    tpu.wait_dma2 semaphore(%323 : memref<!tpu.dma_semaphore, #tpu.memory_space<semaphore_mem>>) src(%320 : memref<1x256xf32, #tpu.memory_space<any>>) dst(%321 : memref<1x256xf32, #tpu.memory_space<vmem>>)
    %c16 = arith.constant 16 : index
    %c0_297 = arith.constant 0 : index
    %324 = vector.load %arg6[%c16, %c0_297] : memref<32x256xf32, #tpu.memory_space<vmem>>, vector<16x256xf32>
    %c6_i32_298 = arith.constant 6 : i32
    %325 = tpu.dynamic_rotate %324 by %c6_i32_298 dim 1 : vector<16x256xf32>, i32 -> vector<16x256xf32>
    %c15_i32_299 = arith.constant 15 : i32
    %326 = tpu.dynamic_rotate %325 by %c15_i32_299 dim 0 : vector<16x256xf32>, i32 -> vector<16x256xf32>
    %c5_i32_300 = arith.constant 5 : i32
    %327 = tpu.dynamic_rotate %324 by %c5_i32_300 dim 1 : vector<16x256xf32>, i32 -> vector<16x256xf32>
    %c14_i32_301 = arith.constant 14 : i32
    %328 = tpu.dynamic_rotate %327 by %c14_i32_301 dim 0 : vector<16x256xf32>, i32 -> vector<16x256xf32>
    %329 = arith.mulf %326, %328 : vector<16x256xf32>
    %c4_i32_302 = arith.constant 4 : i32
    %330 = tpu.dynamic_rotate %324 by %c4_i32_302 dim 1 : vector<16x256xf32>, i32 -> vector<16x256xf32>
    %c13_i32_303 = arith.constant 13 : i32
    %331 = tpu.dynamic_rotate %330 by %c13_i32_303 dim 0 : vector<16x256xf32>, i32 -> vector<16x256xf32>
    %332 = arith.mulf %329, %331 : vector<16x256xf32>
    %c3_i32_304 = arith.constant 3 : i32
    %333 = tpu.dynamic_rotate %324 by %c3_i32_304 dim 1 : vector<16x256xf32>, i32 -> vector<16x256xf32>
    %c12_i32_305 = arith.constant 12 : i32
    %334 = tpu.dynamic_rotate %333 by %c12_i32_305 dim 0 : vector<16x256xf32>, i32 -> vector<16x256xf32>
    %335 = arith.mulf %332, %334 : vector<16x256xf32>
    %c2_i32_306 = arith.constant 2 : i32
    %336 = tpu.dynamic_rotate %324 by %c2_i32_306 dim 1 : vector<16x256xf32>, i32 -> vector<16x256xf32>
    %c11_i32_307 = arith.constant 11 : i32
    %337 = tpu.dynamic_rotate %336 by %c11_i32_307 dim 0 : vector<16x256xf32>, i32 -> vector<16x256xf32>
    %338 = arith.mulf %335, %337 : vector<16x256xf32>
    %c1_i32_308 = arith.constant 1 : i32
    %339 = tpu.dynamic_rotate %324 by %c1_i32_308 dim 1 : vector<16x256xf32>, i32 -> vector<16x256xf32>
    %c10_i32_309 = arith.constant 10 : i32
    %340 = tpu.dynamic_rotate %339 by %c10_i32_309 dim 0 : vector<16x256xf32>, i32 -> vector<16x256xf32>
    %341 = arith.mulf %338, %340 : vector<16x256xf32>
    %c9_i32_310 = arith.constant 9 : i32
    %342 = tpu.dynamic_rotate %324 by %c9_i32_310 dim 0 : vector<16x256xf32>, i32 -> vector<16x256xf32>
    %343 = arith.mulf %341, %342 : vector<16x256xf32>
    %344 = arith.mulf %160, %343 : vector<16x256xf32>
    %cst_311 = arith.constant dense<0.000000e+00> : vector<256xf32>
    %345 = vector.multi_reduction <add>, %344, %cst_311 [0] : vector<16x256xf32> to vector<256xf32>
    %346 = vector.shape_cast %345 : vector<256xf32> to vector<1x256xf32>
    %347 = arith.mulf %346, %161 : vector<1x256xf32>
    %cst_312 = arith.constant dense<0.000000e+00> : vector<1xf32>
    %348 = vector.multi_reduction <add>, %347, %cst_312 [1] : vector<1x256xf32> to vector<1xf32>
    %349 = vector.shape_cast %348 : vector<1xf32> to vector<1x1xf32>
    %cst_313 = arith.constant 0.000000e+00 : f32
    %350 = vector.broadcast %cst_313 : f32 to vector<1x1xf32>
    %351 = arith.subf %350, %349 : vector<1x1xf32>
    %352 = math.exp %351 : vector<1x1xf32>
    %cst_314 = arith.constant 1.000000e+00 : f32
    %353 = vector.broadcast %cst_314 : f32 to vector<1x1xf32>
    %354 = arith.addf %353, %352 : vector<1x1xf32>
    %cst_315 = arith.constant 1.000000e+00 : f32
    %355 = vector.broadcast %cst_315 : f32 to vector<1x1xf32>
    %356 = arith.divf %355, %354 : vector<1x1xf32>
    %c1_316 = arith.constant 1 : index
    %c0_317 = arith.constant 0 : index
    %357 = vector.load %arg5[%c1_316, %c0_317] : memref<2x1xf32, #tpu.memory_space<vmem>>, vector<1x1xf32>
    tpu.vector_store %arg5[%c1_316, %c0_317], %356 {strides = array<i32>} : memref<2x1xf32, #tpu.memory_space<vmem>>, vector<1x1xf32>,
    return
  }
  func.func @transform_1(%arg0: i32, %arg1: memref<2x16xi32, #tpu.memory_space<smem>>) -> (i32, i32) {
    %c0_i32 = arith.constant 0 : i32
    %c0_i32_0 = arith.constant 0 : i32
    %c0_i32_1 = arith.constant 0 : i32
    return %c0_i32, %c0_i32_0 : i32, i32
  }
  func.func @transform_2(%arg0: i32, %arg1: memref<2x16xi32, #tpu.memory_space<smem>>) -> (i32, i32) {
    %c0_i32 = arith.constant 0 : i32
    %c0_i32_0 = arith.constant 0 : i32
    %c0_i32_1 = arith.constant 0 : i32
    return %c0_i32, %c0_i32_0 : i32, i32
  }
  func.func @transform_3(%arg0: i32, %arg1: memref<2x16xi32, #tpu.memory_space<smem>>) -> (i32, i32) {
    %c0_i32 = arith.constant 0 : i32
    %c0_i32_0 = arith.constant 0 : i32
    %c0_i32_1 = arith.constant 0 : i32
    return %c0_i32, %c0_i32_0 : i32, i32
  }
}

</mosaic_0001>

<llo_original>
// kernel: hdc_forward.1
$region0: #{hdc_forward.1}
  #allocation0 [shape = 'u32[]', space=smem, size = 0x4, offset = 0x4, fixed_abs, tag = 'smem constant byte address 0x4 - core index']
  #allocation1 [shape = 'u32[72,128]{1,0:T(1,128)}', space=vmem, size = 0x9000, scoped, tag = 'internal scratch']
  #allocation2 [shape = 'f32[32,256]{1,0:T(8,128)}', space=vmem, size = 0x8000, scoped, tag = 'scratch operand']
  #allocation3 [shape = 's32[32]{0}', space=sflag, size = 0x80, scoped, tag = 'scratch operand']
  #allocation4 [shape = 's32[1]{0}', space=sflag, size = 0x4, scoped, tag = 'scoped memory for hdc_forward.1']
  #allocation5 [shape = 'u8[1024]{0}', space=smem, size = 0x400, scoped, tag = 'prefetched SMEM operand 0']
  #allocation6 [shape = 's32[]', space=sflag, size = 0x4, offset = 0, fixed_abs, tag = 'sflag constant byte address 0x0 - dummy sync flag']
  #allocation7 [shape = 's32[]', space=sflag, size = 0x4, offset = 0, fixed_abs, tag = 'sflag constant byte address 0x0 - dummy sync flag']
  #allocation8 [shape = 's32[]', space=sflag, size = 0x4, offset = 0, fixed_abs, tag = 'sflag constant byte address 0x0 - dummy sync flag']
  #allocation9 [shape = 's32[]', space=sflag, size = 0x4, offset = 0, fixed_abs, tag = 'sflag constant byte address 0x0 - dummy sync flag']
  #allocation10 [shape = 's32[]', space=sflag, size = 0x4, offset = 0, fixed_abs, tag = 'sflag constant byte address 0x0 - dummy sync flag']
  #allocation11 [shape = 's32[]', space=sflag, size = 0x4, offset = 0, fixed_abs, tag = 'sflag constant byte address 0x0 - dummy sync flag']
  #allocation12 [shape = 's32[]', space=sflag, size = 0x4, offset = 0, fixed_abs, tag = 'sflag constant byte address 0x0 - dummy sync flag']
  #allocation13 [shape = 's32[]', space=sflag, size = 0x4, offset = 0, fixed_abs, tag = 'sflag constant byte address 0x0 - dummy sync flag']
  #allocation14 [shape = 's32[]', space=sflag, size = 0x4, offset = 0, fixed_abs, tag = 'sflag constant byte address 0x0 - dummy sync flag']
  #allocation15 [shape = 's32[]', space=sflag, size = 0x4, offset = 0, fixed_abs, tag = 'sflag constant byte address 0x0 - dummy sync flag']
  #allocation16 [shape = 's32[]', space=sflag, size = 0x4, offset = 0, fixed_abs, tag = 'sflag constant byte address 0x0 - dummy sync flag']
  #allocation17 [shape = 's32[]', space=sflag, size = 0x4, offset = 0, fixed_abs, tag = 'sflag constant byte address 0x0 - dummy sync flag']
  #allocation18 [shape = 's32[]', space=sflag, size = 0x4, offset = 0, fixed_abs, tag = 'sflag constant byte address 0x0 - dummy sync flag']
  #allocation19 [shape = 's32[]', space=sflag, size = 0x4, offset = 0, fixed_abs, tag = 'sflag constant byte address 0x0 - dummy sync flag']
  #allocation20 [shape = 's32[]', space=sflag, size = 0x4, offset = 0, fixed_abs, tag = 'sflag constant byte address 0x0 - dummy sync flag']
  #allocation21 [shape = 's32[]', space=sflag, size = 0x4, offset = 0, fixed_abs, tag = 'sflag constant byte address 0x0 - dummy sync flag']
  #allocation22 [shape = 's32[]', space=sflag, size = 0x4, offset = 0, fixed_abs, tag = 'sflag constant byte address 0x0 - dummy sync flag']
  #allocation23 [shape = 's32[]', space=sflag, size = 0x4, offset = 0, fixed_abs, tag = 'sflag constant byte address 0x0 - dummy sync flag']
  #allocation24 [shape = 's32[]', space=sflag, size = 0x4, offset = 0, fixed_abs, tag = 'sflag constant byte address 0x0 - dummy sync flag']
  #allocation25 [shape = 's32[]', space=sflag, size = 0x4, offset = 0, fixed_abs, tag = 'sflag constant byte address 0x0 - dummy sync flag']
  #allocation26 [shape = 's32[]', space=sflag, size = 0x4, offset = 0, fixed_abs, tag = 'sflag constant byte address 0x0 - dummy sync flag']
  #allocation27 [shape = 's32[]', space=sflag, size = 0x4, offset = 0, fixed_abs, tag = 'sflag constant byte address 0x0 - dummy sync flag']
  #allocation28 [shape = 's32[]', space=sflag, size = 0x4, offset = 0, fixed_abs, tag = 'sflag constant byte address 0x0 - dummy sync flag']
  #allocation29 [shape = 's32[]', space=sflag, size = 0x4, offset = 0, fixed_abs, tag = 'sflag constant byte address 0x0 - dummy sync flag']
  #allocation30 [shape = 's32[]', space=sflag, size = 0x4, offset = 0, fixed_abs, tag = 'sflag constant byte address 0x0 - dummy sync flag']
  #allocation31 [shape = 's32[]', space=sflag, size = 0x4, offset = 0, fixed_abs, tag = 'sflag constant byte address 0x0 - dummy sync flag']
  #allocation32 [shape = 's32[]', space=sflag, size = 0x4, offset = 0, fixed_abs, tag = 'sflag constant byte address 0x0 - dummy sync flag']
  #allocation33 [shape = 's32[]', space=sflag, size = 0x4, offset = 0, fixed_abs, tag = 'sflag constant byte address 0x0 - dummy sync flag']
  #allocation34 [shape = 's32[]', space=sflag, size = 0x4, offset = 0, fixed_abs, tag = 'sflag constant byte address 0x0 - dummy sync flag']
  #allocation35 [shape = 's32[]', space=sflag, size = 0x4, offset = 0, fixed_abs, tag = 'sflag constant byte address 0x0 - dummy sync flag']
  #allocation36 [shape = 's32[]', space=sflag, size = 0x4, offset = 0, fixed_abs, tag = 'sflag constant byte address 0x0 - dummy sync flag']
  #allocation37 [shape = 's32[]', space=sflag, size = 0x4, offset = 0, fixed_abs, tag = 'sflag constant byte address 0x0 - dummy sync flag']
  %s0 = inlined_call_operand.vmem [shape: s32[2,16], index: 0, kind: input, shape index: {}]
  %s1 = inlined_call_operand.hbm [shape: f32[3200,256], index: 1, kind: input, shape index: {}]
  %s2 = inlined_call_operand.vmem [shape: f32[16,256], index: 2, kind: input, shape index: {}]
  %s3 = inlined_call_operand.vmem [shape: f32[1,256], index: 3, kind: input, shape index: {}]
  %s4 = inlined_call_operand.vmem [shape: f32[2,1], index: 4, kind: output, shape index: {}]
  %s5 = sld [smem:[#allocation0]]
  $region18: #{hdc_forward.1} parent=0
    _
  %s7 = ssub.s32 1, %s5
  %s8 = scalar_select 0, %s7, %s5
  %s10 = sshll.u32 %s0, 4
  %s11 = int_to_ptr.vmem [resolvable:$true] %s10
  %13 = dma.vmem_to_smem %s11, 32, [#allocation5], [#allocation4]
  %15 = dma.done [#allocation4], 32
  %16 = sfence
  // Predicated region
  $region2: #{hdc_forward.1} parent=0 // pred_check
    _
  $region3: #{hdc_forward.1} parent=0 // pred_check_branch
    %18 = sbr.rel (0) target = $region5
  $region4: #{hdc_forward.1} parent=0 // pred_region
    _
  $region5: #{hdc_forward.1} parent=0 // pred_fallthru
    _
  // Predicated region
  $region6: #{hdc_forward.1} parent=0 // pred_check
    _
  $region7: #{hdc_forward.1} parent=0 // pred_check_branch
    %20 = sbr.rel (0) target = $region9
  $region8: #{hdc_forward.1} parent=0 // pred_region
    _
  $region9: #{hdc_forward.1} parent=0 // pred_fallthru
    _
  %s21 = sld [smem:[#allocation5]]
  %s22 = sshrl.u32 %s21, 3
  %s23 = sand.u32 %s21, 7
  %s24 = smul.u32 %s22, 16
  %s25 = sadd.s32 %s23, %s24
  %s26 = scalar_lea.hbm %s1, %s25
  %s27 = sshll.u32 %s26, 4
  %s28 = int_to_ptr.hbm [resolvable:$true] %s27
  %s29 = sshll.u32 [#allocation2], 4
  %s30 = int_to_ptr.vmem [resolvable:$true] %s29
  %34 = dma.hbm_to_vmem [thread:$0]  %s28, 32, %s30, [#allocation3], 128, 128, 1
  %s35 = sld [smem:[#allocation5 + $0x1]]
  %s36 = sshrl.u32 %s35, 3
  %s37 = sand.u32 %s35, 7
  %s38 = smul.u32 %s36, 16
  %s39 = sadd.s32 %s37, %s38
  %s40 = scalar_lea.hbm %s1, %s39
  %s41 = scalar_lea.vmem [#allocation2], 1
  %s42 = scalar_lea.sflag [#allocation3], 1
  %s43 = sshll.u32 %s40, 4
  %s44 = int_to_ptr.hbm [resolvable:$true] %s43
  %s45 = sshll.u32 %s41, 4
  %s46 = int_to_ptr.vmem [resolvable:$true] %s45
  %50 = dma.hbm_to_vmem [thread:$0]  %s44, 32, %s46, %s42, 128, 128, 1
  %s51 = sld [smem:[#allocation5 + $0x2]]
  %s52 = sshrl.u32 %s51, 3
  %s53 = sand.u32 %s51, 7
  %s54 = smul.u32 %s52, 16
  %s55 = sadd.s32 %s53, %s54
  %s56 = scalar_lea.hbm %s1, %s55
  %s57 = scalar_lea.vmem [#allocation2], 2
  %s58 = scalar_lea.sflag [#allocation3], 2
  %s59 = sshll.u32 %s56, 4
  %s60 = int_to_ptr.hbm [resolvable:$true] %s59
  %s61 = sshll.u32 %s57, 4
  %s62 = int_to_ptr.vmem [resolvable:$true] %s61
  %66 = dma.hbm_to_vmem [thread:$0]  %s60, 32, %s62, %s58, 128, 128, 1
  %s67 = sld [smem:[#allocation5 + $0x3]]
  %s68 = sshrl.u32 %s67, 3
  %s69 = sand.u32 %s67, 7
  %s70 = smul.u32 %s68, 16
  %s71 = sadd.s32 %s69, %s70
  %s72 = scalar_lea.hbm %s1, %s71
  %s73 = scalar_lea.vmem [#allocation2], 3
  %s74 = scalar_lea.sflag [#allocation3], 3
  %s75 = sshll.u32 %s72, 4
  %s76 = int_to_ptr.hbm [resolvable:$true] %s75
  %s77 = sshll.u32 %s73, 4
  %s78 = int_to_ptr.vmem [resolvable:$true] %s77
  %82 = dma.hbm_to_vmem [thread:$0]  %s76, 32, %s78, %s74, 128, 128, 1
  %s83 = sld [smem:[#allocation5 + $0x4]]
  %s84 = sshrl.u32 %s83, 3
  %s85 = sand.u32 %s83, 7
  %s86 = smul.u32 %s84, 16
  %s87 = sadd.s32 %s85, %s86
  %s88 = scalar_lea.hbm %s1, %s87
  %s89 = scalar_lea.vmem [#allocation2], 4
  %s90 = scalar_lea.sflag [#allocation3], 4
  %s91 = sshll.u32 %s88, 4
  %s92 = int_to_ptr.hbm [resolvable:$true] %s91
  %s93 = sshll.u32 %s89, 4
  %s94 = int_to_ptr.vmem [resolvable:$true] %s93
  %98 = dma.hbm_to_vmem [thread:$0]  %s92, 32, %s94, %s90, 128, 128, 1
  %s99 = sld [smem:[#allocation5 + $0x5]]
  %s100 = sshrl.u32 %s99, 3
  %s101 = sand.u32 %s99, 7
  %s102 = smul.u32 %s100, 16
  %s103 = sadd.s32 %s101, %s102
  %s104 = scalar_lea.hbm %s1, %s103
  %s105 = scalar_lea.vmem [#allocation2], 5
  %s106 = scalar_lea.sflag [#allocation3], 5
  %s107 = sshll.u32 %s104, 4
  %s108 = int_to_ptr.hbm [resolvable:$true] %s107
  %s109 = sshll.u32 %s105, 4
  %s110 = int_to_ptr.vmem [resolvable:$true] %s109
  %114 = dma.hbm_to_vmem [thread:$0]  %s108, 32, %s110, %s106, 128, 128, 1
  %s115 = sld [smem:[#allocation5 + $0x6]]
  %s116 = sshrl.u32 %s115, 3
  %s117 = sand.u32 %s115, 7
  %s118 = smul.u32 %s116, 16
  %s119 = sadd.s32 %s117, %s118
  %s120 = scalar_lea.hbm %s1, %s119
  %s121 = scalar_lea.vmem [#allocation2], 6
  %s122 = scalar_lea.sflag [#allocation3], 6
  %s123 = sshll.u32 %s120, 4
  %s124 = int_to_ptr.hbm [resolvable:$true] %s123
  %s125 = sshll.u32 %s121, 4
  %s126 = int_to_ptr.vmem [resolvable:$true] %s125
  %130 = dma.hbm_to_vmem [thread:$0]  %s124, 32, %s126, %s122, 128, 128, 1
  %s131 = sld [smem:[#allocation5 + $0x7]]
  %s132 = sshrl.u32 %s131, 3
  %s133 = sand.u32 %s131, 7
  %s134 = smul.u32 %s132, 16
  %s135 = sadd.s32 %s133, %s134
  %s136 = scalar_lea.hbm %s1, %s135
  %s137 = scalar_lea.vmem [#allocation2], 7
  %s138 = scalar_lea.sflag [#allocation3], 7
  %s139 = sshll.u32 %s136, 4
  %s140 = int_to_ptr.hbm [resolvable:$true] %s139
  %s141 = sshll.u32 %s137, 4
  %s142 = int_to_ptr.vmem [resolvable:$true] %s141
  %146 = dma.hbm_to_vmem [thread:$0]  %s140, 32, %s142, %s138, 128, 128, 1
  %s147 = sld [smem:[#allocation5 + $0x8]]
  %s148 = sshrl.u32 %s147, 3
  %s149 = sand.u32 %s147, 7
  %s150 = smul.u32 %s148, 16
  %s151 = sadd.s32 %s149, %s150
  %s152 = scalar_lea.hbm %s1, %s151
  %s153 = scalar_lea.vmem [#allocation2], 16
  %s154 = scalar_lea.sflag [#allocation3], 8
  %s155 = sshll.u32 %s152, 4
  %s156 = int_to_ptr.hbm [resolvable:$true] %s155
  %s157 = sshll.u32 %s153, 4
  %s158 = int_to_ptr.vmem [resolvable:$true] %s157
  %162 = dma.hbm_to_vmem [thread:$0]  %s156, 32, %s158, %s154, 128, 128, 1
  %s163 = sld [smem:[#allocation5 + $0x9]]
  %s164 = sshrl.u32 %s163, 3
  %s165 = sand.u32 %s163, 7
  %s166 = smul.u32 %s164, 16
  %s167 = sadd.s32 %s165, %s166
  %s168 = scalar_lea.hbm %s1, %s167
  %s169 = scalar_lea.vmem [#allocation2], 17
  %s170 = scalar_lea.sflag [#allocation3], 9
  %s171 = sshll.u32 %s168, 4
  %s172 = int_to_ptr.hbm [resolvable:$true] %s171
  %s173 = sshll.u32 %s169, 4
  %s174 = int_to_ptr.vmem [resolvable:$true] %s173
  %178 = dma.hbm_to_vmem [thread:$0]  %s172, 32, %s174, %s170, 128, 128, 1
  %s179 = sld [smem:[#allocation5 + $0xa]]
  %s180 = sshrl.u32 %s179, 3
  %s181 = sand.u32 %s179, 7
  %s182 = smul.u32 %s180, 16
  %s183 = sadd.s32 %s181, %s182
  %s184 = scalar_lea.hbm %s1, %s183
  %s185 = scalar_lea.vmem [#allocation2], 18
  %s186 = scalar_lea.sflag [#allocation3], 10
  %s187 = sshll.u32 %s184, 4
  %s188 = int_to_ptr.hbm [resolvable:$true] %s187
  %s189 = sshll.u32 %s185, 4
  %s190 = int_to_ptr.vmem [resolvable:$true] %s189
  %194 = dma.hbm_to_vmem [thread:$0]  %s188, 32, %s190, %s186, 128, 128, 1
  %s195 = sld [smem:[#allocation5 + $0xb]]
  %s196 = sshrl.u32 %s195, 3
  %s197 = sand.u32 %s195, 7
  %s198 = smul.u32 %s196, 16
  %s199 = sadd.s32 %s197, %s198
  %s200 = scalar_lea.hbm %s1, %s199
  %s201 = scalar_lea.vmem [#allocation2], 19
  %s202 = scalar_lea.sflag [#allocation3], 11
  %s203 = sshll.u32 %s200, 4
  %s204 = int_to_ptr.hbm [resolvable:$true] %s203
  %s205 = sshll.u32 %s201, 4
  %s206 = int_to_ptr.vmem [resolvable:$true] %s205
  %210 = dma.hbm_to_vmem [thread:$0]  %s204, 32, %s206, %s202, 128, 128, 1
  %s211 = sld [smem:[#allocation5 + $0xc]]
  %s212 = sshrl.u32 %s211, 3
  %s213 = sand.u32 %s211, 7
  %s214 = smul.u32 %s212, 16
  %s215 = sadd.s32 %s213, %s214
  %s216 = scalar_lea.hbm %s1, %s215
  %s217 = scalar_lea.vmem [#allocation2], 20
  %s218 = scalar_lea.sflag [#allocation3], 12
  %s219 = sshll.u32 %s216, 4
  %s220 = int_to_ptr.hbm [resolvable:$true] %s219
  %s221 = sshll.u32 %s217, 4
  %s222 = int_to_ptr.vmem [resolvable:$true] %s221
  %226 = dma.hbm_to_vmem [thread:$0]  %s220, 32, %s222, %s218, 128, 128, 1
  %s227 = sld [smem:[#allocation5 + $0xd]]
  %s228 = sshrl.u32 %s227, 3
  %s229 = sand.u32 %s227, 7
  %s230 = smul.u32 %s228, 16
  %s231 = sadd.s32 %s229, %s230
  %s232 = scalar_lea.hbm %s1, %s231
  %s233 = scalar_lea.vmem [#allocation2], 21
  %s234 = scalar_lea.sflag [#allocation3], 13
  %s235 = sshll.u32 %s232, 4
  %s236 = int_to_ptr.hbm [resolvable:$true] %s235
  %s237 = sshll.u32 %s233, 4
  %s238 = int_to_ptr.vmem [resolvable:$true] %s237
  %242 = dma.hbm_to_vmem [thread:$0]  %s236, 32, %s238, %s234, 128, 128, 1
  %s243 = sld [smem:[#allocation5 + $0xe]]
  %s244 = sshrl.u32 %s243, 3
  %s245 = sand.u32 %s243, 7
  %s246 = smul.u32 %s244, 16
  %s247 = sadd.s32 %s245, %s246
  %s248 = scalar_lea.hbm %s1, %s247
  %s249 = scalar_lea.vmem [#allocation2], 22
  %s250 = scalar_lea.sflag [#allocation3], 14
  %s251 = sshll.u32 %s248, 4
  %s252 = int_to_ptr.hbm [resolvable:$true] %s251
  %s253 = sshll.u32 %s249, 4
  %s254 = int_to_ptr.vmem [resolvable:$true] %s253
  %258 = dma.hbm_to_vmem [thread:$0]  %s252, 32, %s254, %s250, 128, 128, 1
  %s259 = sld [smem:[#allocation5 + $0xf]]
  %s260 = sshrl.u32 %s259, 3
  %s261 = sand.u32 %s259, 7
  %s262 = smul.u32 %s260, 16
  %s263 = sadd.s32 %s261, %s262
  %s264 = scalar_lea.hbm %s1, %s263
  %s265 = scalar_lea.vmem [#allocation2], 23
  %s266 = scalar_lea.sflag [#allocation3], 15
  %s267 = sshll.u32 %s264, 4
  %s268 = int_to_ptr.hbm [resolvable:$true] %s267
  %s269 = sshll.u32 %s265, 4
  %s270 = int_to_ptr.vmem [resolvable:$true] %s269
  %274 = dma.hbm_to_vmem [thread:$0]  %s268, 32, %s270, %s266, 128, 128, 1
  %s275 = sld [smem:[#allocation5 + $0x80]]
  %s276 = sshrl.u32 %s275, 3
  %s277 = sand.u32 %s275, 7
  %s278 = smul.u32 %s276, 16
  %s279 = sadd.s32 %s277, %s278
  %s280 = scalar_lea.hbm %s1, %s279
  %s281 = scalar_lea.vmem [#allocation2], 32
  %s282 = scalar_lea.sflag [#allocation3], 16
  %s283 = sshll.u32 %s280, 4
  %s284 = int_to_ptr.hbm [resolvable:$true] %s283
  %s285 = sshll.u32 %s281, 4
  %s286 = int_to_ptr.vmem [resolvable:$true] %s285
  %290 = dma.hbm_to_vmem [thread:$0]  %s284, 32, %s286, %s282, 128, 128, 1
  %s291 = sld [smem:[#allocation5 + $0x81]]
  %s292 = sshrl.u32 %s291, 3
  %s293 = sand.u32 %s291, 7
  %s294 = smul.u32 %s292, 16
  %s295 = sadd.s32 %s293, %s294
  %s296 = scalar_lea.hbm %s1, %s295
  %s297 = scalar_lea.vmem [#allocation2], 33
  %s298 = scalar_lea.sflag [#allocation3], 17
  %s299 = sshll.u32 %s296, 4
  %s300 = int_to_ptr.hbm [resolvable:$true] %s299
  %s301 = sshll.u32 %s297, 4
  %s302 = int_to_ptr.vmem [resolvable:$true] %s301
  %306 = dma.hbm_to_vmem [thread:$0]  %s300, 32, %s302, %s298, 128, 128, 1
  %s307 = sld [smem:[#allocation5 + $0x82]]
  %s308 = sshrl.u32 %s307, 3
  %s309 = sand.u32 %s307, 7
  %s310 = smul.u32 %s308, 16
  %s311 = sadd.s32 %s309, %s310
  %s312 = scalar_lea.hbm %s1, %s311
  %s313 = scalar_lea.vmem [#allocation2], 34
  %s314 = scalar_lea.sflag [#allocation3], 18
  %s315 = sshll.u32 %s312, 4
  %s316 = int_to_ptr.hbm [resolvable:$true] %s315
  %s317 = sshll.u32 %s313, 4
  %s318 = int_to_ptr.vmem [resolvable:$true] %s317
  %322 = dma.hbm_to_vmem [thread:$0]  %s316, 32, %s318, %s314, 128, 128, 1
  %s323 = sld [smem:[#allocation5 + $0x83]]
  %s324 = sshrl.u32 %s323, 3
  %s325 = sand.u32 %s323, 7
  %s326 = smul.u32 %s324, 16
  %s327 = sadd.s32 %s325, %s326
  %s328 = scalar_lea.hbm %s1, %s327
  %s329 = scalar_lea.vmem [#allocation2], 35
  %s330 = scalar_lea.sflag [#allocation3], 19
  %s331 = sshll.u32 %s328, 4
  %s332 = int_to_ptr.hbm [resolvable:$true] %s331
  %s333 = sshll.u32 %s329, 4
  %s334 = int_to_ptr.vmem [resolvable:$true] %s333
  %338 = dma.hbm_to_vmem [thread:$0]  %s332, 32, %s334, %s330, 128, 128, 1
  %s339 = sld [smem:[#allocation5 + $0x84]]
  %s340 = sshrl.u32 %s339, 3
  %s341 = sand.u32 %s339, 7
  %s342 = smul.u32 %s340, 16
  %s343 = sadd.s32 %s341, %s342
  %s344 = scalar_lea.hbm %s1, %s343
  %s345 = scalar_lea.vmem [#allocation2], 36
  %s346 = scalar_lea.sflag [#allocation3], 20
  %s347 = sshll.u32 %s344, 4
  %s348 = int_to_ptr.hbm [resolvable:$true] %s347
  %s349 = sshll.u32 %s345, 4
  %s350 = int_to_ptr.vmem [resolvable:$true] %s349
  %354 = dma.hbm_to_vmem [thread:$0]  %s348, 32, %s350, %s346, 128, 128, 1
  %s355 = sld [smem:[#allocation5 + $0x85]]
  %s356 = sshrl.u32 %s355, 3
  %s357 = sand.u32 %s355, 7
  %s358 = smul.u32 %s356, 16
  %s359 = sadd.s32 %s357, %s358
  %s360 = scalar_lea.hbm %s1, %s359
  %s361 = scalar_lea.vmem [#allocation2], 37
  %s362 = scalar_lea.sflag [#allocation3], 21
  %s363 = sshll.u32 %s360, 4
  %s364 = int_to_ptr.hbm [resolvable:$true] %s363
  %s365 = sshll.u32 %s361, 4
  %s366 = int_to_ptr.vmem [resolvable:$true] %s365
  %370 = dma.hbm_to_vmem [thread:$0]  %s364, 32, %s366, %s362, 128, 128, 1
  %s371 = sld [smem:[#allocation5 + $0x86]]
  %s372 = sshrl.u32 %s371, 3
  %s373 = sand.u32 %s371, 7
  %s374 = smul.u32 %s372, 16
  %s375 = sadd.s32 %s373, %s374
  %s376 = scalar_lea.hbm %s1, %s375
  %s377 = scalar_lea.vmem [#allocation2], 38
  %s378 = scalar_lea.sflag [#allocation3], 22
  %s379 = sshll.u32 %s376, 4
  %s380 = int_to_ptr.hbm [resolvable:$true] %s379
  %s381 = sshll.u32 %s377, 4
  %s382 = int_to_ptr.vmem [resolvable:$true] %s381
  %386 = dma.hbm_to_vmem [thread:$0]  %s380, 32, %s382, %s378, 128, 128, 1
  %s387 = sld [smem:[#allocation5 + $0x87]]
  %s388 = sshrl.u32 %s387, 3
  %s389 = sand.u32 %s387, 7
  %s390 = smul.u32 %s388, 16
  %s391 = sadd.s32 %s389, %s390
  %s392 = scalar_lea.hbm %s1, %s391
  %s393 = scalar_lea.vmem [#allocation2], 39
  %s394 = scalar_lea.sflag [#allocation3], 23
  %s395 = sshll.u32 %s392, 4
  %s396 = int_to_ptr.hbm [resolvable:$true] %s395
  %s397 = sshll.u32 %s393, 4
  %s398 = int_to_ptr.vmem [resolvable:$true] %s397
  %402 = dma.hbm_to_vmem [thread:$0]  %s396, 32, %s398, %s394, 128, 128, 1
  %s403 = sld [smem:[#allocation5 + $0x88]]
  %s404 = sshrl.u32 %s403, 3
  %s405 = sand.u32 %s403, 7
  %s406 = smul.u32 %s404, 16
  %s407 = sadd.s32 %s405, %s406
  %s408 = scalar_lea.hbm %s1, %s407
  %s409 = scalar_lea.vmem [#allocation2], 48
  %s410 = scalar_lea.sflag [#allocation3], 24
  %s411 = sshll.u32 %s408, 4
  %s412 = int_to_ptr.hbm [resolvable:$true] %s411
  %s413 = sshll.u32 %s409, 4
  %s414 = int_to_ptr.vmem [resolvable:$true] %s413
  %418 = dma.hbm_to_vmem [thread:$0]  %s412, 32, %s414, %s410, 128, 128, 1
  %s419 = sld [smem:[#allocation5 + $0x89]]
  %s420 = sshrl.u32 %s419, 3
  %s421 = sand.u32 %s419, 7
  %s422 = smul.u32 %s420, 16
  %s423 = sadd.s32 %s421, %s422
  %s424 = scalar_lea.hbm %s1, %s423
  %s425 = scalar_lea.vmem [#allocation2], 49
  %s426 = scalar_lea.sflag [#allocation3], 25
  %s427 = sshll.u32 %s424, 4
  %s428 = int_to_ptr.hbm [resolvable:$true] %s427
  %s429 = sshll.u32 %s425, 4
  %s430 = int_to_ptr.vmem [resolvable:$true] %s429
  %434 = dma.hbm_to_vmem [thread:$0]  %s428, 32, %s430, %s426, 128, 128, 1
  %s435 = sld [smem:[#allocation5 + $0x8a]]
  %s436 = sshrl.u32 %s435, 3
  %s437 = sand.u32 %s435, 7
  %s438 = smul.u32 %s436, 16
  %s439 = sadd.s32 %s437, %s438
  %s440 = scalar_lea.hbm %s1, %s439
  %s441 = scalar_lea.vmem [#allocation2], 50
  %s442 = scalar_lea.sflag [#allocation3], 26
  %s443 = sshll.u32 %s440, 4
  %s444 = int_to_ptr.hbm [resolvable:$true] %s443
  %s445 = sshll.u32 %s441, 4
  %s446 = int_to_ptr.vmem [resolvable:$true] %s445
  %450 = dma.hbm_to_vmem [thread:$0]  %s444, 32, %s446, %s442, 128, 128, 1
  %s451 = sld [smem:[#allocation5 + $0x8b]]
  %s452 = sshrl.u32 %s451, 3
  %s453 = sand.u32 %s451, 7
  %s454 = smul.u32 %s452, 16
  %s455 = sadd.s32 %s453, %s454
  %s456 = scalar_lea.hbm %s1, %s455
  %s457 = scalar_lea.vmem [#allocation2], 51
  %s458 = scalar_lea.sflag [#allocation3], 27
  %s459 = sshll.u32 %s456, 4
  %s460 = int_to_ptr.hbm [resolvable:$true] %s459
  %s461 = sshll.u32 %s457, 4
  %s462 = int_to_ptr.vmem [resolvable:$true] %s461
  %466 = dma.hbm_to_vmem [thread:$0]  %s460, 32, %s462, %s458, 128, 128, 1
  %s467 = sld [smem:[#allocation5 + $0x8c]]
  %s468 = sshrl.u32 %s467, 3
  %s469 = sand.u32 %s467, 7
  %s470 = smul.u32 %s468, 16
  %s471 = sadd.s32 %s469, %s470
  %s472 = scalar_lea.hbm %s1, %s471
  %s473 = scalar_lea.vmem [#allocation2], 52
  %s474 = scalar_lea.sflag [#allocation3], 28
  %s475 = sshll.u32 %s472, 4
  %s476 = int_to_ptr.hbm [resolvable:$true] %s475
  %s477 = sshll.u32 %s473, 4
  %s478 = int_to_ptr.vmem [resolvable:$true] %s477
  %482 = dma.hbm_to_vmem [thread:$0]  %s476, 32, %s478, %s474, 128, 128, 1
  %s483 = sld [smem:[#allocation5 + $0x8d]]
  %s484 = sshrl.u32 %s483, 3
  %s485 = sand.u32 %s483, 7
  %s486 = smul.u32 %s484, 16
  %s487 = sadd.s32 %s485, %s486
  %s488 = scalar_lea.hbm %s1, %s487
  %s489 = scalar_lea.vmem [#allocation2], 53
  %s490 = scalar_lea.sflag [#allocation3], 29
  %s491 = sshll.u32 %s488, 4
  %s492 = int_to_ptr.hbm [resolvable:$true] %s491
  %s493 = sshll.u32 %s489, 4
  %s494 = int_to_ptr.vmem [resolvable:$true] %s493
  %498 = dma.hbm_to_vmem [thread:$0]  %s492, 32, %s494, %s490, 128, 128, 1
  %s499 = sld [smem:[#allocation5 + $0x8e]]
  %s500 = sshrl.u32 %s499, 3
  %s501 = sand.u32 %s499, 7
  %s502 = smul.u32 %s500, 16
  %s503 = sadd.s32 %s501, %s502
  %s504 = scalar_lea.hbm %s1, %s503
  %s505 = scalar_lea.vmem [#allocation2], 54
  %s506 = scalar_lea.sflag [#allocation3], 30
  %s507 = sshll.u32 %s504, 4
  %s508 = int_to_ptr.hbm [resolvable:$true] %s507
  %s509 = sshll.u32 %s505, 4
  %s510 = int_to_ptr.vmem [resolvable:$true] %s509
  %514 = dma.hbm_to_vmem [thread:$0]  %s508, 32, %s510, %s506, 128, 128, 1
  %s515 = sld [smem:[#allocation5 + $0x8f]]
  %s516 = sshrl.u32 %s515, 3
  %s517 = sand.u32 %s515, 7
  %s518 = smul.u32 %s516, 16
  %s519 = sadd.s32 %s517, %s518
  %s520 = scalar_lea.hbm %s1, %s519
  %s521 = scalar_lea.vmem [#allocation2], 55
  %s522 = scalar_lea.sflag [#allocation3], 31
  %s523 = sshll.u32 %s520, 4
  %s524 = int_to_ptr.hbm [resolvable:$true] %s523
  %s525 = sshll.u32 %s521, 4
  %s526 = int_to_ptr.vmem [resolvable:$true] %s525
  %530 = dma.hbm_to_vmem [thread:$0]  %s524, 32, %s526, %s522, 128, 128, 1
  %v531 = vld [vmem:[%s2] sm:$0xff]
  %v532 = vld [vmem:[%s2 + $0x8] sm:$0xff]
  %v533 = vld [vmem:[%s2 + $0x10] sm:$0xff]
  %v534 = vld [vmem:[%s2 + $0x18] sm:$0xff]
  %v535 = vld [vmem:[%s3] sm:$0x3]
  %s536 = smul.u32 1, 2
  %s537 = sshll.u32 %s536, 4
  %538 = dma.done [#allocation3], %s537
  %s539 = sshll.u32 %s536, 4
  %540 = dma.done %s42, %s539
  %s541 = sshll.u32 %s536, 4
  %542 = dma.done %s58, %s541
  %s543 = sshll.u32 %s536, 4
  %544 = dma.done %s74, %s543
  %s545 = sshll.u32 %s536, 4
  %546 = dma.done %s90, %s545
  %s547 = sshll.u32 %s536, 4
  %548 = dma.done %s106, %s547
  %s549 = sshll.u32 %s536, 4
  %550 = dma.done %s122, %s549
  %s551 = sshll.u32 %s536, 4
  %552 = dma.done %s138, %s551
  %s553 = sshll.u32 %s536, 4
  %554 = dma.done %s154, %s553
  %s555 = sshll.u32 %s536, 4
  %556 = dma.done %s170, %s555
  %s557 = sshll.u32 %s536, 4
  %558 = dma.done %s186, %s557
  %s559 = sshll.u32 %s536, 4
  %560 = dma.done %s202, %s559
  %s561 = sshll.u32 %s536, 4
  %562 = dma.done %s218, %s561
  %s563 = sshll.u32 %s536, 4
  %564 = dma.done %s234, %s563
  %s565 = sshll.u32 %s536, 4
  %566 = dma.done %s250, %s565
  %s567 = sshll.u32 %s536, 4
  %568 = dma.done %s266, %s567
  %v569 = vld [vmem:[#allocation2] sm:$0xff]
  %v570 = vld [vmem:[#allocation2 + $0x8] sm:$0xff]
  %v571 = vld [vmem:[#allocation2 + $0x10] sm:$0xff]
  %v572 = vld [vmem:[#allocation2 + $0x18] sm:$0xff]
  %573 = vrot.lane.b32.xlu0 %v569, 6
  %v574 = vpop.permute.xlu0 %573
  %575 = vrot.lane.b32.xlu0 %v571, 6
  %v576 = vpop.permute.xlu0 %575
  %577 = vrot.lane.b32.xlu0 %v570, 6
  %v578 = vpop.permute.xlu0 %577
  %579 = vrot.lane.b32.xlu0 %v572, 6
  %v580 = vpop.permute.xlu0 %579
  %v581 = vlaneseq
  %v582 = vand.u32 %v581, 127
  %vm583 = vcmp.lt.s32.totalorder %v582, 6
  %v584 = vsel %vm583, %v574, %v578
  %v585 = vsel %vm583, %v576, %v580
  %v586 = vsel %vm583, %v578, %v574
  %v587 = vsel %vm583, %v580, %v576
  %v588 = vrot.slane %v586, 1
  %v589 = vrot.slane %v584, 1
  %v590 = vrot.slane %v587, 1
  %v591 = vrot.slane %v585, 1
  %v592 = vlaneseq
  %v593 = vshrl.u32 %v592, 7
  %vm594 = vcmp.lt.s32.totalorder %v593, 7
  %v595 = vsel %vm594, %v588, %v590
  %v596 = vsel %vm594, %v589, %v591
  %v597 = vsel %vm594, %v590, %v588
  %v598 = vsel %vm594, %v591, %v589
  %599 = vrot.lane.b32.xlu0 %v569, 5
  %v600 = vpop.permute.xlu0 %599
  %601 = vrot.lane.b32.xlu0 %v571, 5
  %v602 = vpop.permute.xlu0 %601
  %603 = vrot.lane.b32.xlu0 %v570, 5
  %v604 = vpop.permute.xlu0 %603
  %605 = vrot.lane.b32.xlu0 %v572, 5
  %v606 = vpop.permute.xlu0 %605
  %vm607 = vcmp.lt.s32.totalorder %v582, 5
  %v608 = vsel %vm607, %v600, %v604
  %v609 = vsel %vm607, %v602, %v606
  %v610 = vsel %vm607, %v604, %v600
  %v611 = vsel %vm607, %v606, %v602
  %v612 = vrot.slane %v610, 2
  %v613 = vrot.slane %v608, 2
  %v614 = vrot.slane %v611, 2
  %v615 = vrot.slane %v609, 2
  %vm616 = vcmp.lt.s32.totalorder %v593, 6
  %v617 = vsel %vm616, %v612, %v614
  %v618 = vsel %vm616, %v613, %v615
  %v619 = vsel %vm616, %v614, %v612
  %v620 = vsel %vm616, %v615, %v613
  %v621 = vmul.f32 %v595, %v617
  %v622 = vmul.f32 %v596, %v618
  %v623 = vmul.f32 %v597, %v619
  %v624 = vmul.f32 %v598, %v620
  %625 = vrot.lane.b32.xlu0 %v569, 4
  %v626 = vpop.permute.xlu0 %625
  %627 = vrot.lane.b32.xlu0 %v571, 4
  %v628 = vpop.permute.xlu0 %627
  %629 = vrot.lane.b32.xlu0 %v570, 4
  %v630 = vpop.permute.xlu0 %629
  %631 = vrot.lane.b32.xlu0 %v572, 4
  %v632 = vpop.permute.xlu0 %631
  %vm633 = vcmp.lt.s32.totalorder %v582, 4
  %v634 = vsel %vm633, %v626, %v630
  %v635 = vsel %vm633, %v628, %v632
  %v636 = vsel %vm633, %v630, %v626
  %v637 = vsel %vm633, %v632, %v628
  %v638 = vrot.slane %v636, 3
  %v639 = vrot.slane %v634, 3
  %v640 = vrot.slane %v637, 3
  %v641 = vrot.slane %v635, 3
  %vm642 = vcmp.lt.s32.totalorder %v593, 5
  %v643 = vsel %vm642, %v638, %v640
  %v644 = vsel %vm642, %v639, %v641
  %v645 = vsel %vm642, %v640, %v638
  %v646 = vsel %vm642, %v641, %v639
  %v647 = vmul.f32 %v621, %v643
  %v648 = vmul.f32 %v622, %v644
  %v649 = vmul.f32 %v623, %v645
  %v650 = vmul.f32 %v624, %v646
  %651 = vrot.lane.b32.xlu0 %v569, 3
  %v652 = vpop.permute.xlu0 %651
  %653 = vrot.lane.b32.xlu0 %v571, 3
  %v654 = vpop.permute.xlu0 %653
  %655 = vrot.lane.b32.xlu0 %v570, 3
  %v656 = vpop.permute.xlu0 %655
  %657 = vrot.lane.b32.xlu0 %v572, 3
  %v658 = vpop.permute.xlu0 %657
  %vm659 = vcmp.lt.s32.totalorder %v582, 3
  %v660 = vsel %vm659, %v652, %v656
  %v661 = vsel %vm659, %v654, %v658
  %v662 = vsel %vm659, %v656, %v652
  %v663 = vsel %vm659, %v658, %v654
  %v664 = vrot.slane %v662, 4
  %v665 = vrot.slane %v660, 4
  %v666 = vrot.slane %v663, 4
  %v667 = vrot.slane %v661, 4
  %vm668 = vcmp.lt.s32.totalorder %v593, 4
  %v669 = vsel %vm668, %v664, %v666
  %v670 = vsel %vm668, %v665, %v667
  %v671 = vsel %vm668, %v666, %v664
  %v672 = vsel %vm668, %v667, %v665
  %v673 = vmul.f32 %v647, %v669
  %v674 = vmul.f32 %v648, %v670
  %v675 = vmul.f32 %v649, %v671
  %v676 = vmul.f32 %v650, %v672
  %677 = vrot.lane.b32.xlu0 %v569, 2
  %v678 = vpop.permute.xlu0 %677
  %679 = vrot.lane.b32.xlu0 %v571, 2
  %v680 = vpop.permute.xlu0 %679
  %681 = vrot.lane.b32.xlu0 %v570, 2
  %v682 = vpop.permute.xlu0 %681
  %683 = vrot.lane.b32.xlu0 %v572, 2
  %v684 = vpop.permute.xlu0 %683
  %vm685 = vcmp.lt.s32.totalorder %v582, 2
  %v686 = vsel %vm685, %v678, %v682
  %v687 = vsel %vm685, %v680, %v684
  %v688 = vsel %vm685, %v682, %v678
  %v689 = vsel %vm685, %v684, %v680
  %v690 = vrot.slane %v688, 5
  %v691 = vrot.slane %v686, 5
  %v692 = vrot.slane %v689, 5
  %v693 = vrot.slane %v687, 5
  %vm694 = vcmp.lt.s32.totalorder %v593, 3
  %v695 = vsel %vm694, %v690, %v692
  %v696 = vsel %vm694, %v691, %v693
  %v697 = vsel %vm694, %v692, %v690
  %v698 = vsel %vm694, %v693, %v691
  %v699 = vmul.f32 %v673, %v695
  %v700 = vmul.f32 %v674, %v696
  %v701 = vmul.f32 %v675, %v697
  %v702 = vmul.f32 %v676, %v698
  %703 = vrot.lane.b32.xlu0 %v569, 1
  %v704 = vpop.permute.xlu0 %703
  %705 = vrot.lane.b32.xlu0 %v571, 1
  %v706 = vpop.permute.xlu0 %705
  %707 = vrot.lane.b32.xlu0 %v570, 1
  %v708 = vpop.permute.xlu0 %707
  %709 = vrot.lane.b32.xlu0 %v572, 1
  %v710 = vpop.permute.xlu0 %709
  %vm711 = vcmp.lt.s32.totalorder %v582, 1
  %v712 = vsel %vm711, %v704, %v708
  %v713 = vsel %vm711, %v706, %v710
  %v714 = vsel %vm711, %v708, %v704
  %v715 = vsel %vm711, %v710, %v706
  %v716 = vrot.slane %v714, 6
  %v717 = vrot.slane %v712, 6
  %v718 = vrot.slane %v715, 6
  %v719 = vrot.slane %v713, 6
  %vm720 = vcmp.lt.s32.totalorder %v593, 2
  %v721 = vsel %vm720, %v716, %v718
  %v722 = vsel %vm720, %v717, %v719
  %v723 = vsel %vm720, %v718, %v716
  %v724 = vsel %vm720, %v719, %v717
  %v725 = vmul.f32 %v699, %v721
  %v726 = vmul.f32 %v700, %v722
  %v727 = vmul.f32 %v701, %v723
  %v728 = vmul.f32 %v702, %v724
  %v729 = vrot.slane %v569, 7
  %v730 = vrot.slane %v570, 7
  %v731 = vrot.slane %v571, 7
  %v732 = vrot.slane %v572, 7
  %vm733 = vcmp.lt.s32.totalorder %v593, 1
  %v734 = vsel %vm733, %v729, %v731
  %v735 = vsel %vm733, %v730, %v732
  %v736 = vsel %vm733, %v731, %v729
  %v737 = vsel %vm733, %v732, %v730
  %v738 = vmul.f32 %v725, %v734
  %v739 = vmul.f32 %v726, %v735
  %v740 = vmul.f32 %v727, %v736
  %v741 = vmul.f32 %v728, %v737
  %v742 = vmul.f32 %v531, %v738
  %v743 = vmul.f32 %v532, %v739
  %v744 = vmul.f32 %v533, %v740
  %v745 = vmul.f32 %v534, %v741
  %v746 = vadd.f32 %v742, %v744
  %v747 = vrot.slane %v746, 4
  %v748 = vadd.f32 %v746, %v747
  %v749 = vrot.slane %v748, 2
  %v750 = vadd.f32 %v748, %v749
  %v751 = vrot.slane %v750, 1
  %v752 = vadd.f32 %v750, %v751
  %v753 = vadd.f32 %v743, %v745
  %v754 = vrot.slane %v753, 4
  %v755 = vadd.f32 %v753, %v754
  %v756 = vrot.slane %v755, 2
  %v757 = vadd.f32 %v755, %v756
  %v758 = vrot.slane %v757, 1
  %v759 = vadd.f32 %v757, %v758
  %v761 = vperm.slane %v535, 0
  %v762 = vperm.slane %v535, 1
  %v765 = vmul.f32 %v752, %v761
  %v766 = vmul.f32 %v759, %v762
  %vm767 = vcmask 1040384
  %v768 = vsel %vm767, %v765, 0.0
  %v769 = vsel %vm767, %v766, 0.0
  %v770 = vadd.f32 %v768, %v769
  %771 = vadd.xlane.f32.xlu0 %v770
  %v772 = vpop.xlane.xlu0 %771
  %v773 = vsub.f32 0.0, %v772
  %v774 = vmul.f32 %v773, 1.442695
  %v775 = vpow.pop %v774
  %v776 = vadd.f32 %v775, 1.0
  %v777 = vrcp.pop %v776
  %v778 = vmul.f32 %v776, %v777
  %v779 = vsub.f32 1.0, %v778
  %v780 = vmul.f32 %v777, %v779
  %v781 = vadd.f32 %v777, %v780
  %vm782 = vweird.f32 %v776
  %vm783 = vweird.f32 %v777
  %vm784 = vmor %vm782, %vm783
  %v785 = vsel %vm784, %v777, %v781
  %v786 = vand.u32 2147483647, %v776
  %vm787 = vcmp.eq.f32.partialorder %v786, 8.507059e+37
  %v788 = vand.u32 %v776, 2147483648
  %v789 = vor.u32 1.1754944e-38, %v788
  %v790 = vsel %vm787, %v789, %v785
  %v791 = vmul.f32 1.0, %v790
  %vm792 = vcmask 0
  %793 = vst.msk [vmem:[%s4] sm:$0x1] %vm792, %v791
  %s794 = sshll.u32 %s536, 4
  %795 = dma.done %s282, %s794
  %s796 = sshll.u32 %s536, 4
  %797 = dma.done %s298, %s796
  %s798 = sshll.u32 %s536, 4
  %799 = dma.done %s314, %s798
  %s800 = sshll.u32 %s536, 4
  %801 = dma.done %s330, %s800
  %s802 = sshll.u32 %s536, 4
  %803 = dma.done %s346, %s802
  %s804 = sshll.u32 %s536, 4
  %805 = dma.done %s362, %s804
  %s806 = sshll.u32 %s536, 4
  %807 = dma.done %s378, %s806
  %s808 = sshll.u32 %s536, 4
  %809 = dma.done %s394, %s808
  %s810 = sshll.u32 %s536, 4
  %811 = dma.done %s410, %s810
  %s812 = sshll.u32 %s536, 4
  %813 = dma.done %s426, %s812
  %s814 = sshll.u32 %s536, 4
  %815 = dma.done %s442, %s814
  %s816 = sshll.u32 %s536, 4
  %817 = dma.done %s458, %s816
  %s818 = sshll.u32 %s536, 4
  %819 = dma.done %s474, %s818
  %s820 = sshll.u32 %s536, 4
  %821 = dma.done %s490, %s820
  %s822 = sshll.u32 %s536, 4
  %823 = dma.done %s506, %s822
  %s824 = sshll.u32 %s536, 4
  %825 = dma.done %s522, %s824
  %v826 = vld [vmem:[#allocation2 + $0x20] sm:$0xff]
  %v827 = vld [vmem:[#allocation2 + $0x28] sm:$0xff]
  %v828 = vld [vmem:[#allocation2 + $0x30] sm:$0xff]
  %v829 = vld [vmem:[#allocation2 + $0x38] sm:$0xff]
  %830 = vrot.lane.b32.xlu0 %v826, 6
  %v831 = vpop.permute.xlu0 %830
  %832 = vrot.lane.b32.xlu0 %v828, 6
  %v833 = vpop.permute.xlu0 %832
  %834 = vrot.lane.b32.xlu0 %v827, 6
  %v835 = vpop.permute.xlu0 %834
  %836 = vrot.lane.b32.xlu0 %v829, 6
  %v837 = vpop.permute.xlu0 %836
  %v838 = vsel %vm583, %v831, %v835
  %v839 = vsel %vm583, %v833, %v837
  %v840 = vsel %vm583, %v835, %v831
  %v841 = vsel %vm583, %v837, %v833
  %v842 = vrot.slane %v840, 1
  %v843 = vrot.slane %v838, 1
  %v844 = vrot.slane %v841, 1
  %v845 = vrot.slane %v839, 1
  %v846 = vsel %vm594, %v842, %v844
  %v847 = vsel %vm594, %v843, %v845
  %v848 = vsel %vm594, %v844, %v842
  %v849 = vsel %vm594, %v845, %v843
  %850 = vrot.lane.b32.xlu0 %v826, 5
  %v851 = vpop.permute.xlu0 %850
  %852 = vrot.lane.b32.xlu0 %v828, 5
  %v853 = vpop.permute.xlu0 %852
  %854 = vrot.lane.b32.xlu0 %v827, 5
  %v855 = vpop.permute.xlu0 %854
  %856 = vrot.lane.b32.xlu0 %v829, 5
  %v857 = vpop.permute.xlu0 %856
  %v858 = vsel %vm607, %v851, %v855
  %v859 = vsel %vm607, %v853, %v857
  %v860 = vsel %vm607, %v855, %v851
  %v861 = vsel %vm607, %v857, %v853
  %v862 = vrot.slane %v860, 2
  %v863 = vrot.slane %v858, 2
  %v864 = vrot.slane %v861, 2
  %v865 = vrot.slane %v859, 2
  %v866 = vsel %vm616, %v862, %v864
  %v867 = vsel %vm616, %v863, %v865
  %v868 = vsel %vm616, %v864, %v862
  %v869 = vsel %vm616, %v865, %v863
  %v870 = vmul.f32 %v846, %v866
  %v871 = vmul.f32 %v847, %v867
  %v872 = vmul.f32 %v848, %v868
  %v873 = vmul.f32 %v849, %v869
  %874 = vrot.lane.b32.xlu0 %v826, 4
  %v875 = vpop.permute.xlu0 %874
  %876 = vrot.lane.b32.xlu0 %v828, 4
  %v877 = vpop.permute.xlu0 %876
  %878 = vrot.lane.b32.xlu0 %v827, 4
  %v879 = vpop.permute.xlu0 %878
  %880 = vrot.lane.b32.xlu0 %v829, 4
  %v881 = vpop.permute.xlu0 %880
  %v882 = vsel %vm633, %v875, %v879
  %v883 = vsel %vm633, %v877, %v881
  %v884 = vsel %vm633, %v879, %v875
  %v885 = vsel %vm633, %v881, %v877
  %v886 = vrot.slane %v884, 3
  %v887 = vrot.slane %v882, 3
  %v888 = vrot.slane %v885, 3
  %v889 = vrot.slane %v883, 3
  %v890 = vsel %vm642, %v886, %v888
  %v891 = vsel %vm642, %v887, %v889
  %v892 = vsel %vm642, %v888, %v886
  %v893 = vsel %vm642, %v889, %v887
  %v894 = vmul.f32 %v870, %v890
  %v895 = vmul.f32 %v871, %v891
  %v896 = vmul.f32 %v872, %v892
  %v897 = vmul.f32 %v873, %v893
  %898 = vrot.lane.b32.xlu0 %v826, 3
  %v899 = vpop.permute.xlu0 %898
  %900 = vrot.lane.b32.xlu0 %v828, 3
  %v901 = vpop.permute.xlu0 %900
  %902 = vrot.lane.b32.xlu0 %v827, 3
  %v903 = vpop.permute.xlu0 %902
  %904 = vrot.lane.b32.xlu0 %v829, 3
  %v905 = vpop.permute.xlu0 %904
  %v906 = vsel %vm659, %v899, %v903
  %v907 = vsel %vm659, %v901, %v905
  %v908 = vsel %vm659, %v903, %v899
  %v909 = vsel %vm659, %v905, %v901
  %v910 = vrot.slane %v908, 4
  %v911 = vrot.slane %v906, 4
  %v912 = vrot.slane %v909, 4
  %v913 = vrot.slane %v907, 4
  %v914 = vsel %vm668, %v910, %v912
  %v915 = vsel %vm668, %v911, %v913
  %v916 = vsel %vm668, %v912, %v910
  %v917 = vsel %vm668, %v913, %v911
  %v918 = vmul.f32 %v894, %v914
  %v919 = vmul.f32 %v895, %v915
  %v920 = vmul.f32 %v896, %v916
  %v921 = vmul.f32 %v897, %v917
  %922 = vrot.lane.b32.xlu0 %v826, 2
  %v923 = vpop.permute.xlu0 %922
  %924 = vrot.lane.b32.xlu0 %v828, 2
  %v925 = vpop.permute.xlu0 %924
  %926 = vrot.lane.b32.xlu0 %v827, 2
  %v927 = vpop.permute.xlu0 %926
  %928 = vrot.lane.b32.xlu0 %v829, 2
  %v929 = vpop.permute.xlu0 %928
  %v930 = vsel %vm685, %v923, %v927
  %v931 = vsel %vm685, %v925, %v929
  %v932 = vsel %vm685, %v927, %v923
  %v933 = vsel %vm685, %v929, %v925
  %v934 = vrot.slane %v932, 5
  %v935 = vrot.slane %v930, 5
  %v936 = vrot.slane %v933, 5
  %v937 = vrot.slane %v931, 5
  %v938 = vsel %vm694, %v934, %v936
  %v939 = vsel %vm694, %v935, %v937
  %v940 = vsel %vm694, %v936, %v934
  %v941 = vsel %vm694, %v937, %v935
  %v942 = vmul.f32 %v918, %v938
  %v943 = vmul.f32 %v919, %v939
  %v944 = vmul.f32 %v920, %v940
  %v945 = vmul.f32 %v921, %v941
  %946 = vrot.lane.b32.xlu0 %v826, 1
  %v947 = vpop.permute.xlu0 %946
  %948 = vrot.lane.b32.xlu0 %v828, 1
  %v949 = vpop.permute.xlu0 %948
  %950 = vrot.lane.b32.xlu0 %v827, 1
  %v951 = vpop.permute.xlu0 %950
  %952 = vrot.lane.b32.xlu0 %v829, 1
  %v953 = vpop.permute.xlu0 %952
  %v954 = vsel %vm711, %v947, %v951
  %v955 = vsel %vm711, %v949, %v953
  %v956 = vsel %vm711, %v951, %v947
  %v957 = vsel %vm711, %v953, %v949
  %v958 = vrot.slane %v956, 6
  %v959 = vrot.slane %v954, 6
  %v960 = vrot.slane %v957, 6
  %v961 = vrot.slane %v955, 6
  %v962 = vsel %vm720, %v958, %v960
  %v963 = vsel %vm720, %v959, %v961
  %v964 = vsel %vm720, %v960, %v958
  %v965 = vsel %vm720, %v961, %v959
  %v966 = vmul.f32 %v942, %v962
  %v967 = vmul.f32 %v943, %v963
  %v968 = vmul.f32 %v944, %v964
  %v969 = vmul.f32 %v945, %v965
  %v970 = vrot.slane %v826, 7
  %v971 = vrot.slane %v827, 7
  %v972 = vrot.slane %v828, 7
  %v973 = vrot.slane %v829, 7
  %v974 = vsel %vm733, %v970, %v972
  %v975 = vsel %vm733, %v971, %v973
  %v976 = vsel %vm733, %v972, %v970
  %v977 = vsel %vm733, %v973, %v971
  %v978 = vmul.f32 %v966, %v974
  %v979 = vmul.f32 %v967, %v975
  %v980 = vmul.f32 %v968, %v976
  %v981 = vmul.f32 %v969, %v977
  %v982 = vmul.f32 %v531, %v978
  %v983 = vmul.f32 %v532, %v979
  %v984 = vmul.f32 %v533, %v980
  %v985 = vmul.f32 %v534, %v981
  %v986 = vadd.f32 %v982, %v984
  %v987 = vrot.slane %v986, 4
  %v988 = vadd.f32 %v986, %v987
  %v989 = vrot.slane %v988, 2
  %v990 = vadd.f32 %v988, %v989
  %v991 = vrot.slane %v990, 1
  %v992 = vadd.f32 %v990, %v991
  %v993 = vadd.f32 %v983, %v985
  %v994 = vrot.slane %v993, 4
  %v995 = vadd.f32 %v993, %v994
  %v996 = vrot.slane %v995, 2
  %v997 = vadd.f32 %v995, %v996
  %v998 = vrot.slane %v997, 1
  %v999 = vadd.f32 %v997, %v998
  %v1000 = vmul.f32 %v992, %v761
  %v1001 = vmul.f32 %v999, %v762
  %v1002 = vsel %vm767, %v1000, 0.0
  %v1003 = vsel %vm767, %v1001, 0.0
  %v1004 = vadd.f32 %v1002, %v1003
  %1005 = vadd.xlane.f32.xlu0 %v1004
  %v1006 = vpop.xlane.xlu0 %1005
  %v1007 = vsub.f32 0.0, %v1006
  %v1008 = vmul.f32 %v1007, 1.442695
  %v1009 = vpow.pop %v1008
  %v1010 = vadd.f32 %v1009, 1.0
  %v1011 = vrcp.pop %v1010
  %v1012 = vmul.f32 %v1010, %v1011
  %v1013 = vsub.f32 1.0, %v1012
  %v1014 = vmul.f32 %v1011, %v1013
  %v1015 = vadd.f32 %v1011, %v1014
  %vm1016 = vweird.f32 %v1010
  %vm1017 = vweird.f32 %v1011
  %vm1018 = vmor %vm1016, %vm1017
  %v1019 = vsel %vm1018, %v1011, %v1015
  %v1020 = vand.u32 2147483647, %v1010
  %vm1021 = vcmp.eq.f32.partialorder %v1020, 8.507059e+37
  %v1022 = vand.u32 %v1010, 2147483648
  %v1023 = vor.u32 1.1754944e-38, %v1022
  %v1024 = vsel %vm1021, %v1023, %v1019
  %v1025 = vmul.f32 1.0, %v1024
  %1026 = vst.msk [vmem:[%s4 + $0x1] sm:$0x1] %vm792, %v1025
  // Predicated region
  $region10: #{hdc_forward.1} parent=0 // pred_check
    _
  $region11: #{hdc_forward.1} parent=0 // pred_check_branch
    %1028 = sbr.rel (0) target = $region13
  $region12: #{hdc_forward.1} parent=0 // pred_region
    _
  $region13: #{hdc_forward.1} parent=0 // pred_fallthru
    _
  // Predicated region
  $region14: #{hdc_forward.1} parent=0 // pred_check
    _
  $region15: #{hdc_forward.1} parent=0 // pred_check_branch
    %1030 = sbr.rel (0) target = $region17
  $region16: #{hdc_forward.1} parent=0 // pred_region
    _
  $region17: #{hdc_forward.1} parent=0 // pred_fallthru
    _
  %1031 = vsyncmov [#allocation3]
  %s1032 = vpop.sfrf %1031
  %p1033 = scmp.eq.s32.totalorder %s1032, 0
  %p1034 = pneg %p1033
  %1036 = shalt.err (%p1034)
  %s1037 = scalar_lea.sflag [#allocation3], 1
  %1038 = vsyncmov %s1037
  %s1039 = vpop.sfrf %1038
  %p1040 = scmp.eq.s32.totalorder %s1039, 0
  %p1041 = pneg %p1040
  %1043 = shalt.err (%p1041)
  %s1044 = scalar_lea.sflag [#allocation3], 2
  %1045 = vsyncmov %s1044
  %s1046 = vpop.sfrf %1045
  %p1047 = scmp.eq.s32.totalorder %s1046, 0
  %p1048 = pneg %p1047
  %1050 = shalt.err (%p1048)
  %s1051 = scalar_lea.sflag [#allocation3], 3
  %1052 = vsyncmov %s1051
  %s1053 = vpop.sfrf %1052
  %p1054 = scmp.eq.s32.totalorder %s1053, 0
  %p1055 = pneg %p1054
  %1057 = shalt.err (%p1055)
  %s1058 = scalar_lea.sflag [#allocation3], 4
  %1059 = vsyncmov %s1058
  %s1060 = vpop.sfrf %1059
  %p1061 = scmp.eq.s32.totalorder %s1060, 0
  %p1062 = pneg %p1061
  %1064 = shalt.err (%p1062)
  %s1065 = scalar_lea.sflag [#allocation3], 5
  %1066 = vsyncmov %s1065
  %s1067 = vpop.sfrf %1066
  %p1068 = scmp.eq.s32.totalorder %s1067, 0
  %p1069 = pneg %p1068
  %1071 = shalt.err (%p1069)
  %s1072 = scalar_lea.sflag [#allocation3], 6
  %1073 = vsyncmov %s1072
  %s1074 = vpop.sfrf %1073
  %p1075 = scmp.eq.s32.totalorder %s1074, 0
  %p1076 = pneg %p1075
  %1078 = shalt.err (%p1076)
  %s1079 = scalar_lea.sflag [#allocation3], 7
  %1080 = vsyncmov %s1079
  %s1081 = vpop.sfrf %1080
  %p1082 = scmp.eq.s32.totalorder %s1081, 0
  %p1083 = pneg %p1082
  %1085 = shalt.err (%p1083)
  %s1086 = scalar_lea.sflag [#allocation3], 8
  %1087 = vsyncmov %s1086
  %s1088 = vpop.sfrf %1087
  %p1089 = scmp.eq.s32.totalorder %s1088, 0
  %p1090 = pneg %p1089
  %1092 = shalt.err (%p1090)
  %s1093 = scalar_lea.sflag [#allocation3], 9
  %1094 = vsyncmov %s1093
  %s1095 = vpop.sfrf %1094
  %p1096 = scmp.eq.s32.totalorder %s1095, 0
  %p1097 = pneg %p1096
  %1099 = shalt.err (%p1097)
  %s1100 = scalar_lea.sflag [#allocation3], 10
  %1101 = vsyncmov %s1100
  %s1102 = vpop.sfrf %1101
  %p1103 = scmp.eq.s32.totalorder %s1102, 0
  %p1104 = pneg %p1103
  %1106 = shalt.err (%p1104)
  %s1107 = scalar_lea.sflag [#allocation3], 11
  %1108 = vsyncmov %s1107
  %s1109 = vpop.sfrf %1108
  %p1110 = scmp.eq.s32.totalorder %s1109, 0
  %p1111 = pneg %p1110
  %1113 = shalt.err (%p1111)
  %s1114 = scalar_lea.sflag [#allocation3], 12
  %1115 = vsyncmov %s1114
  %s1116 = vpop.sfrf %1115
  %p1117 = scmp.eq.s32.totalorder %s1116, 0
  %p1118 = pneg %p1117
  %1120 = shalt.err (%p1118)
  %s1121 = scalar_lea.sflag [#allocation3], 13
  %1122 = vsyncmov %s1121
  %s1123 = vpop.sfrf %1122
  %p1124 = scmp.eq.s32.totalorder %s1123, 0
  %p1125 = pneg %p1124
  %1127 = shalt.err (%p1125)
  %s1128 = scalar_lea.sflag [#allocation3], 14
  %1129 = vsyncmov %s1128
  %s1130 = vpop.sfrf %1129
  %p1131 = scmp.eq.s32.totalorder %s1130, 0
  %p1132 = pneg %p1131
  %1134 = shalt.err (%p1132)
  %s1135 = scalar_lea.sflag [#allocation3], 15
  %1136 = vsyncmov %s1135
  %s1137 = vpop.sfrf %1136
  %p1138 = scmp.eq.s32.totalorder %s1137, 0
  %p1139 = pneg %p1138
  %1141 = shalt.err (%p1139)
  %s1142 = scalar_lea.sflag [#allocation3], 16
  %1143 = vsyncmov %s1142
  %s1144 = vpop.sfrf %1143
  %p1145 = scmp.eq.s32.totalorder %s1144, 0
  %p1146 = pneg %p1145
  %1148 = shalt.err (%p1146)
  %s1149 = scalar_lea.sflag [#allocation3], 17
  %1150 = vsyncmov %s1149
  %s1151 = vpop.sfrf %1150
  %p1152 = scmp.eq.s32.totalorder %s1151, 0
  %p1153 = pneg %p1152
  %1155 = shalt.err (%p1153)
  %s1156 = scalar_lea.sflag [#allocation3], 18
  %1157 = vsyncmov %s1156
  %s1158 = vpop.sfrf %1157
  %p1159 = scmp.eq.s32.totalorder %s1158, 0
  %p1160 = pneg %p1159
  %1162 = shalt.err (%p1160)
  %s1163 = scalar_lea.sflag [#allocation3], 19
  %1164 = vsyncmov %s1163
  %s1165 = vpop.sfrf %1164
  %p1166 = scmp.eq.s32.totalorder %s1165, 0
  %p1167 = pneg %p1166
  %1169 = shalt.err (%p1167)
  %s1170 = scalar_lea.sflag [#allocation3], 20
  %1171 = vsyncmov %s1170
  %s1172 = vpop.sfrf %1171
  %p1173 = scmp.eq.s32.totalorder %s1172, 0
  %p1174 = pneg %p1173
  %1176 = shalt.err (%p1174)
  %s1177 = scalar_lea.sflag [#allocation3], 21
  %1178 = vsyncmov %s1177
  %s1179 = vpop.sfrf %1178
  %p1180 = scmp.eq.s32.totalorder %s1179, 0
  %p1181 = pneg %p1180
  %1183 = shalt.err (%p1181)
  %s1184 = scalar_lea.sflag [#allocation3], 22
  %1185 = vsyncmov %s1184
  %s1186 = vpop.sfrf %1185
  %p1187 = scmp.eq.s32.totalorder %s1186, 0
  %p1188 = pneg %p1187
  %1190 = shalt.err (%p1188)
  %s1191 = scalar_lea.sflag [#allocation3], 23
  %1192 = vsyncmov %s1191
  %s1193 = vpop.sfrf %1192
  %p1194 = scmp.eq.s32.totalorder %s1193, 0
  %p1195 = pneg %p1194
  %1197 = shalt.err (%p1195)
  %s1198 = scalar_lea.sflag [#allocation3], 24
  %1199 = vsyncmov %s1198
  %s1200 = vpop.sfrf %1199
  %p1201 = scmp.eq.s32.totalorder %s1200, 0
  %p1202 = pneg %p1201
  %1204 = shalt.err (%p1202)
  %s1205 = scalar_lea.sflag [#allocation3], 25
  %1206 = vsyncmov %s1205
  %s1207 = vpop.sfrf %1206
  %p1208 = scmp.eq.s32.totalorder %s1207, 0
  %p1209 = pneg %p1208
  %1211 = shalt.err (%p1209)
  %s1212 = scalar_lea.sflag [#allocation3], 26
  %1213 = vsyncmov %s1212
  %s1214 = vpop.sfrf %1213
  %p1215 = scmp.eq.s32.totalorder %s1214, 0
  %p1216 = pneg %p1215
  %1218 = shalt.err (%p1216)
  %s1219 = scalar_lea.sflag [#allocation3], 27
  %1220 = vsyncmov %s1219
  %s1221 = vpop.sfrf %1220
  %p1222 = scmp.eq.s32.totalorder %s1221, 0
  %p1223 = pneg %p1222
  %1225 = shalt.err (%p1223)
  %s1226 = scalar_lea.sflag [#allocation3], 28
  %1227 = vsyncmov %s1226
  %s1228 = vpop.sfrf %1227
  %p1229 = scmp.eq.s32.totalorder %s1228, 0
  %p1230 = pneg %p1229
  %1232 = shalt.err (%p1230)
  %s1233 = scalar_lea.sflag [#allocation3], 29
  %1234 = vsyncmov %s1233
  %s1235 = vpop.sfrf %1234
  %p1236 = scmp.eq.s32.totalorder %s1235, 0
  %p1237 = pneg %p1236
  %1239 = shalt.err (%p1237)
  %s1240 = scalar_lea.sflag [#allocation3], 30
  %1241 = vsyncmov %s1240
  %s1242 = vpop.sfrf %1241
  %p1243 = scmp.eq.s32.totalorder %s1242, 0
  %p1244 = pneg %p1243
  %1246 = shalt.err (%p1244)
  %s1247 = scalar_lea.sflag [#allocation3], 31
  %1248 = vsyncmov %s1247
  %s1249 = vpop.sfrf %1248
  %p1250 = scmp.eq.s32.totalorder %s1249, 0
  %p1251 = pneg %p1250
  %1253 = shalt.err (%p1251)

</llo_original>
